<compile_context>
chip_gen: v6e
topology: v6e:2x2x1
jax: 0.10.0
libtpu: 0.0.40
codegen_flags: <defaults>
</compile_context>

<pallas_src>
import math

import jax
import jax.numpy as jnp
import numpy as np
from jax.experimental import pallas as pl
from jax.experimental.pallas import tpu as pltpu

# ---- small, module-consistent config ----
BATCH = 2
SEQ_LEN = 16          # block_size
N_EMB = 128           # lane-dense embedding width
N_HEAD = 4
LN_EPS = 1e-5         # nn.LayerNorm default eps


def _gelu_tanh(z):
    # tanh-approximate GELU: 0.5*z*(1+tanh(sqrt(2/pi)*(z+0.044715*z^3))).
    # Differs from F.gelu's exact-erf form by < ~1e-3 per element; folded into
    # the deliberately derived test tolerance below.
    c = 0.7978845608028654  # sqrt(2/pi)
    return 0.5 * z * (1.0 + jnp.tanh(c * (z + 0.044715 * z * z * z)))


# ----------------------------- Pallas kernel -----------------------------
def make_block_kernel(n_head):
    def kernel(x_ref, ln1g_ref, ln1b_ref, wqkv_ref, bqkv_ref, wo_ref, bo_ref,
               ln2g_ref, ln2b_ref, w1_ref, b1_ref, w2_ref, b2_ref, o_ref):
        bs, T, D = x_ref.shape
        M = bs * T
        hd = D // n_head
        scale = 1.0 / math.sqrt(hd)

        # Fold the batch into the matmul M dimension (merge of two leading dims
        # is layout-free: lanes untouched).
        x = x_ref[...].reshape(M, D)                      # (M, D) f32

        def layer_norm(z, g, b):                          # f32 throughout
            mu = jnp.mean(z, axis=-1, keepdims=True)
            zc = z - mu
            var = jnp.mean(zc * zc, axis=-1, keepdims=True)
            return zc * jax.lax.rsqrt(var + LN_EPS) * g + b

        # ---- ln1 + fused QKV projection (one MXU matmul, bf16 operands) ----
        xn = layer_norm(x, ln1g_ref[...], ln1b_ref[...])
        qkv = jnp.dot(xn.astype(jnp.bfloat16), wqkv_ref[...],
                      preferred_element_type=jnp.float32) + bqkv_ref[...]   # (M, 3D) f32

        # ---- multi-head self-attention ----
        # mask buffer is all ones -> masked_fill is a no-op (un-masked attention);
        # attn_drop / resid_drop are identity at inference.
        heads = []
        for h in range(n_head):
            qh = qkv[:, h * hd:(h + 1) * hd].reshape(bs, T, hd).astype(jnp.bfloat16)
            kh = qkv[:, D + h * hd:D + (h + 1) * hd].reshape(bs, T, hd).astype(jnp.bfloat16)
            vh = qkv[:, 2 * D + h * hd:2 * D + (h + 1) * hd].reshape(bs, T, hd).astype(jnp.bfloat16)
            s = jnp.einsum('bqd,bkd->bqk', qh, kh,
                           preferred_element_type=jnp.float32) * scale      # (bs, T, T) f32
            s = s - jnp.max(s, axis=-1, keepdims=True)
            p = jnp.exp(s)
            p = p * pl.reciprocal(jnp.sum(p, axis=-1, keepdims=True), approx=True)
            oh = jnp.einsum('bqk,bkd->bqd', p.astype(jnp.bfloat16), vh,
                            preferred_element_type=jnp.float32)             # (bs, T, hd)
            heads.append(oh.reshape(M, hd))
        y = jnp.concatenate(heads, axis=-1)                                 # (M, D) f32

        # ---- output projection + residual ----
        y = jnp.dot(y.astype(jnp.bfloat16), wo_ref[...],
                    preferred_element_type=jnp.float32) + bo_ref[...]
        x1 = x + y

        # ---- ln2 + MLP (Linear -> GELU -> Linear) + residual ----
        xn2 = layer_norm(x1, ln2g_ref[...], ln2b_ref[...])
        hmid = jnp.dot(xn2.astype(jnp.bfloat16), w1_ref[...],
                       preferred_element_type=jnp.float32) + b1_ref[...]    # (M, 4D)
        hmid = _gelu_tanh(hmid)
        out = jnp.dot(hmid.astype(jnp.bfloat16), w2_ref[...],
                      preferred_element_type=jnp.float32) + b2_ref[...]     # (M, D)
        o_ref[...] = (x1 + out).reshape(bs, T, D).astype(o_ref.dtype)

    return kernel


# ------------------------------- wrapper -----------------------------------
def block_pallas(x, params, n_head=N_HEAD, num_batch_shards=1):
    """num_batch_shards=1 (default): single grid step, best on single-TC v5e/v6e.
    num_batch_shards=2 on v7x keeps a parallel batch axis so both TCs are busy."""
    B, T, D = x.shape
    Dff = params["w1"].shape[1]
    assert B % num_batch_shards == 0
    bs = B // num_batch_shards
    bf16 = jnp.bfloat16

    def fixed(shape):
        # whole-array 2-D block with a constant index_map: DMA'd into VMEM once.
        return pl.BlockSpec(shape, lambda s: (0, 0))

    def row(v):
        return v.reshape(1, -1)

    return pl.pallas_call(
        make_block_kernel(n_head),
        grid=(num_batch_shards,),
        in_specs=[
            pl.BlockSpec((bs, T, D), lambda s: (s, 0, 0)),    # x (bs sequences / step)
            fixed((1, D)), fixed((1, D)),                     # ln1 gamma / beta (f32)
            fixed((D, 3 * D)), fixed((1, 3 * D)),             # fused QKV weight(bf16)/bias(f32)
            fixed((D, D)), fixed((1, D)),                     # attention out-proj
            fixed((1, D)), fixed((1, D)),                     # ln2 gamma / beta
            fixed((D, Dff)), fixed((1, Dff)),                 # mlp fc1
            fixed((Dff, D)), fixed((1, D)),                   # mlp fc2
        ],
        out_specs=pl.BlockSpec((bs, T, D), lambda s: (s, 0, 0)),
        out_shape=jax.ShapeDtypeStruct((B, T, D), jnp.float32),
        compiler_params=pltpu.CompilerParams(
            dimension_semantics=("parallel",)),   # shard batch axis if sharded (v7x)
    )(
        x,
        row(params["ln1_g"]), row(params["ln1_b"]),
        params["w_qkv"].astype(bf16), row(params["b_qkv"]),
        params["w_o"].astype(bf16), row(params["b_o"]),
        row(params["ln2_g"]), row(params["ln2_b"]),
        params["w1"].astype(bf16), row(params["b1"]),
        params["w2"].astype(bf16), row(params["b2"]),
    )


# --------------------------- params & reference -----------------------------
def init_params(key):
    D = N_EMB
    Dff = 4 * D
    ks = jax.random.split(key, 12)

    def n(k, shape, s=0.05):
        return s * jax.random.normal(k, shape, jnp.float32)

    p = {}
    p["ln1_g"] = 1.0 + 0.1 * jax.random.normal(ks[0], (D,), jnp.float32)
    p["ln1_b"] = 0.1 * jax.random.normal(ks[1], (D,), jnp.float32)
    # nn.Linear query/key/value fused: columns [0:D]=Q, [D:2D]=K, [2D:3D]=V
    p["w_qkv"] = n(ks[2], (D, 3 * D))
    p["b_qkv"] = n(ks[3], (3 * D,))
    p["w_o"] = n(ks[4], (D, D))
    p["b_o"] = n(ks[5], (D,))
    p["ln2_g"] = 1.0 + 0.1 * jax.random.normal(ks[6], (D,), jnp.float32)
    p["ln2_b"] = 0.1 * jax.random.normal(ks[7], (D,), jnp.float32)
    p["w1"] = n(ks[8], (D, Dff))
    p["b1"] = n(ks[9], (Dff,))
    p["w2"] = n(ks[10], (Dff, D))
    p["b2"] = n(ks[11], (D,))
    return p


def block_ref(x, params, n_head=N_HEAD):
    """Pure-JAX reference reproducing the PyTorch Block.forward (eval mode),
    f32 HIGHEST precision, exact-erf GELU."""
    B, T, D = x.shape
    hd = D // n_head
    hp = jax.lax.Precision.HIGHEST

    def ln(z, g, b):
        mu = z.mean(-1, keepdims=True)
        var = ((z - mu) ** 2).mean(-1, keepdims=True)
        return (z - mu) * jax.lax.rsqrt(var + LN_EPS) * g + b

    xn = ln(x, params["ln1_g"], params["ln1_b"])
    qkv = jnp.einsum("btd,de->bte", xn, params["w_qkv"], precision=hp) + params["b_qkv"]
    q, k, v = jnp.split(qkv, 3, axis=-1)
    q = q.reshape(B, T, n_head, hd).transpose(0, 2, 1, 3)
    k = k.reshape(B, T, n_head, hd).transpose(0, 2, 1, 3)
    v = v.reshape(B, T, n_head, hd).transpose(0, 2, 1, 3)
    att = jnp.einsum("bhtd,bhsd->bhts", q, k, precision=hp) * (1.0 / math.sqrt(hd))
    # mask buffer is all ones -> masked_fill is a no-op; dropouts are identity (eval)
    att = jax.nn.softmax(att, axis=-1)
    y = jnp.einsum("bhts,bhsd->bhtd", att, v, precision=hp)
    y = y.transpose(0, 2, 1, 3).reshape(B, T, D)
    y = jnp.einsum("btd,de->bte", y, params["w_o"], precision=hp) + params["b_o"]
    x = x + y
    xn2 = ln(x, params["ln2_g"], params["ln2_b"])
    h = jnp.einsum("btd,df->btf", xn2, params["w1"], precision=hp) + params["b1"]
    h = jax.nn.gelu(h, approximate=False)
    h = jnp.einsum("btf,fd->btd", h, params["w2"], precision=hp) + params["b2"]
    return x + h


if __name__ == "__main__":
    key = jax.random.PRNGKey(0)
    kx, kp = jax.random.split(key)
    x = jax.random.normal(kx, (BATCH, SEQ_LEN, N_EMB), jnp.float32)
    params = init_params(kp)

    y = jax.block_until_ready(block_pallas(x, params))
    y_ref = jax.block_until_ready(block_ref(x, params))

    assert y.shape == (BATCH, SEQ_LEN, N_EMB), y.shape
    # Tolerance derivation (deliberate): bf16 matmul operands (~2^-9 relative)
    # across four chained K in {32..512} dots with f32 accumulation contribute
    # ~3-5e-3 absolute error on O(1) outputs; tanh-GELU vs exact-erf adds
    # <~1e-3 through the 4D->D projection.  Worst-case per-element error
    # ~<1e-2, so test at 2e-2 (2x margin).
    np.testing.assert_allclose(np.asarray(y), np.asarray(y_ref), rtol=2e-2, atol=2e-2)
    print("KERNEL_OK")
</pallas_src>

<mosaic_0001>
module attributes {stable_mosaic.version = 11 : i64} {
  func.func @kernel(%arg0: i32, %arg1: memref<2x16x128xf32, #tpu.memory_space<vmem>>, %arg2: memref<1x128xf32, #tpu.memory_space<vmem>>, %arg3: memref<1x128xf32, #tpu.memory_space<vmem>>, %arg4: memref<128x384xbf16, #tpu.memory_space<vmem>>, %arg5: memref<1x384xf32, #tpu.memory_space<vmem>>, %arg6: memref<128x128xbf16, #tpu.memory_space<vmem>>, %arg7: memref<1x128xf32, #tpu.memory_space<vmem>>, %arg8: memref<1x128xf32, #tpu.memory_space<vmem>>, %arg9: memref<1x128xf32, #tpu.memory_space<vmem>>, %arg10: memref<128x512xbf16, #tpu.memory_space<vmem>>, %arg11: memref<1x512xf32, #tpu.memory_space<vmem>>, %arg12: memref<512x128xbf16, #tpu.memory_space<vmem>>, %arg13: memref<1x128xf32, #tpu.memory_space<vmem>>, %arg14: memref<2x16x128xf32, #tpu.memory_space<vmem>>) attributes {dimension_semantics = [#tpu.dimension_semantics<parallel>], iteration_bounds = array<i64: 1>, scalar_prefetch = 0 : i64, scratch_operands = 0 : i64, tpu.core_type = #tpu.core_type<tc>, window_params = [{transform_indices = @transform_0, window_bounds = array<i64: 2, 16, 128>}, {pipeline_mode = #tpu.pipeline_mode<synchronous>, transform_indices = @transform_1, window_bounds = array<i64: 1, 128>}, {pipeline_mode = #tpu.pipeline_mode<synchronous>, transform_indices = @transform_2, window_bounds = array<i64: 1, 128>}, {pipeline_mode = #tpu.pipeline_mode<synchronous>, transform_indices = @transform_3, window_bounds = array<i64: 128, 384>}, {pipeline_mode = #tpu.pipeline_mode<synchronous>, transform_indices = @transform_4, window_bounds = array<i64: 1, 384>}, {pipeline_mode = #tpu.pipeline_mode<synchronous>, transform_indices = @transform_5, window_bounds = array<i64: 128, 128>}, {pipeline_mode = #tpu.pipeline_mode<synchronous>, transform_indices = @transform_6, window_bounds = array<i64: 1, 128>}, {pipeline_mode = #tpu.pipeline_mode<synchronous>, transform_indices = @transform_7, window_bounds = array<i64: 1, 128>}, {pipeline_mode = #tpu.pipeline_mode<synchronous>, transform_indices = @transform_8, window_bounds = array<i64: 1, 128>}, {pipeline_mode = #tpu.pipeline_mode<synchronous>, transform_indices = @transform_9, window_bounds = array<i64: 128, 512>}, {pipeline_mode = #tpu.pipeline_mode<synchronous>, transform_indices = @transform_10, window_bounds = array<i64: 1, 512>}, {pipeline_mode = #tpu.pipeline_mode<synchronous>, transform_indices = @transform_11, window_bounds = array<i64: 512, 128>}, {pipeline_mode = #tpu.pipeline_mode<synchronous>, transform_indices = @transform_12, window_bounds = array<i64: 1, 128>}, {transform_indices = @transform_13, window_bounds = array<i64: 2, 16, 128>}]} {
    %c0 = arith.constant 0 : index
    %c0_0 = arith.constant 0 : index
    %c0_1 = arith.constant 0 : index
    %0 = vector.load %arg1[%c0, %c0_0, %c0_1] : memref<2x16x128xf32, #tpu.memory_space<vmem>>, vector<2x16x128xf32>
    %1 = vector.shape_cast %0 : vector<2x16x128xf32> to vector<32x128xf32>
    %c0_2 = arith.constant 0 : index
    %c0_3 = arith.constant 0 : index
    %2 = vector.load %arg2[%c0_2, %c0_3] : memref<1x128xf32, #tpu.memory_space<vmem>>, vector<1x128xf32>
    %c0_4 = arith.constant 0 : index
    %c0_5 = arith.constant 0 : index
    %3 = vector.load %arg3[%c0_4, %c0_5] : memref<1x128xf32, #tpu.memory_space<vmem>>, vector<1x128xf32>
    %cst = arith.constant dense<0.000000e+00> : vector<32xf32>
    %4 = vector.multi_reduction <add>, %1, %cst [1] : vector<32x128xf32> to vector<32xf32>
    %5 = vector.shape_cast %4 : vector<32xf32> to vector<32x1xf32>
    %cst_6 = arith.constant 1.280000e+02 : f32
    %6 = vector.broadcast %cst_6 : f32 to vector<32x1xf32>
    %7 = arith.divf %5, %6 : vector<32x1xf32>
    %8 = vector.broadcast %7 : vector<32x1xf32> to vector<32x128xf32>
    %9 = arith.subf %1, %8 : vector<32x128xf32>
    %10 = arith.mulf %9, %9 : vector<32x128xf32>
    %cst_7 = arith.constant dense<0.000000e+00> : vector<32xf32>
    %11 = vector.multi_reduction <add>, %10, %cst_7 [1] : vector<32x128xf32> to vector<32xf32>
    %12 = vector.shape_cast %11 : vector<32xf32> to vector<32x1xf32>
    %cst_8 = arith.constant 1.280000e+02 : f32
    %13 = vector.broadcast %cst_8 : f32 to vector<32x1xf32>
    %14 = arith.divf %12, %13 : vector<32x1xf32>
    %cst_9 = arith.constant 9.99999974E-6 : f32
    %15 = vector.broadcast %cst_9 : f32 to vector<32x1xf32>
    %16 = arith.addf %14, %15 : vector<32x1xf32>
    %17 = math.rsqrt %16 : vector<32x1xf32>
    %18 = vector.broadcast %17 : vector<32x1xf32> to vector<32x128xf32>
    %19 = arith.mulf %9, %18 : vector<32x128xf32>
    %20 = vector.broadcast %2 : vector<1x128xf32> to vector<32x128xf32>
    %21 = arith.mulf %19, %20 : vector<32x128xf32>
    %22 = vector.broadcast %3 : vector<1x128xf32> to vector<32x128xf32>
    %23 = arith.addf %21, %22 : vector<32x128xf32>
    %24 = arith.truncf %23 : vector<32x128xf32> to vector<32x128xbf16>
    %c0_10 = arith.constant 0 : index
    %c0_11 = arith.constant 0 : index
    %25 = vector.load %arg4[%c0_10, %c0_11] : memref<128x384xbf16, #tpu.memory_space<vmem>>, vector<128x384xbf16>
    %cst_12 = arith.constant dense<0.000000e+00> : vector<32x384xf32>
    %26 = tpu.matmul %24, %25, %cst_12 {dimension_numbers = #tpu.dot_dimension_numbers<[1], [0], [0], [1], [0, 0, 1, 1], [], []>} : vector<32x128xbf16>, vector<128x384xbf16>, vector<32x384xf32> -> vector<32x384xf32>
    %c0_13 = arith.constant 0 : index
    %c0_14 = arith.constant 0 : index
    %27 = vector.load %arg5[%c0_13, %c0_14] : memref<1x384xf32, #tpu.memory_space<vmem>>, vector<1x384xf32>
    %28 = vector.broadcast %27 : vector<1x384xf32> to vector<32x384xf32>
    %29 = arith.addf %26, %28 : vector<32x384xf32>
    %30 = vector.extract_strided_slice %29 {offsets = [0, 0], sizes = [32, 32], strides = [1, 1]} : vector<32x384xf32> to vector<32x32xf32>
    %31 = vector.shape_cast %30 : vector<32x32xf32> to vector<2x16x32xf32>
    %32 = arith.truncf %31 : vector<2x16x32xf32> to vector<2x16x32xbf16>
    %33 = vector.extract_strided_slice %29 {offsets = [0, 128], sizes = [32, 32], strides = [1, 1]} : vector<32x384xf32> to vector<32x32xf32>
    %34 = vector.shape_cast %33 : vector<32x32xf32> to vector<2x16x32xf32>
    %35 = arith.truncf %34 : vector<2x16x32xf32> to vector<2x16x32xbf16>
    %36 = vector.extract_strided_slice %29 {offsets = [0, 256], sizes = [32, 32], strides = [1, 1]} : vector<32x384xf32> to vector<32x32xf32>
    %37 = vector.shape_cast %36 : vector<32x32xf32> to vector<2x16x32xf32>
    %38 = arith.truncf %37 : vector<2x16x32xf32> to vector<2x16x32xbf16>
    "tpu.trace_start"() <{level = 10 : i32, message = "bqd,bkd->bqk"}> : () -> ()
    %cst_15 = arith.constant dense<0.000000e+00> : vector<2x16x16xf32>
    %39 = tpu.matmul %32, %35, %cst_15 {dimension_numbers = #tpu.dot_dimension_numbers<[2], [2], [1], [1], [0, 0, 0, 1, 1, 1], [0], [0]>} : vector<2x16x32xbf16>, vector<2x16x32xbf16>, vector<2x16x16xf32> -> vector<2x16x16xf32>
    "tpu.trace_stop"() : () -> ()
    %cst_16 = arith.constant 0.176776692 : f32
    %40 = vector.broadcast %cst_16 : f32 to vector<2x16x16xf32>
    %41 = arith.mulf %39, %40 : vector<2x16x16xf32>
    %cst_17 = arith.constant dense<0xFF800000> : vector<2x16xf32>
    %42 = vector.multi_reduction <maximumf>, %41, %cst_17 [2] : vector<2x16x16xf32> to vector<2x16xf32>
    %43 = vector.shape_cast %42 : vector<2x16xf32> to vector<2x16x1xf32>
    %44 = vector.broadcast %43 : vector<2x16x1xf32> to vector<2x16x16xf32>
    %45 = arith.subf %41, %44 : vector<2x16x16xf32>
    %46 = math.exp %45 : vector<2x16x16xf32>
    %cst_18 = arith.constant dense<0.000000e+00> : vector<2x16xf32>
    %47 = vector.multi_reduction <add>, %46, %cst_18 [2] : vector<2x16x16xf32> to vector<2x16xf32>
    %48 = vector.shape_cast %47 : vector<2x16xf32> to vector<2x16x1xf32>
    %49 = tpu.reciprocal %48 {approx = true} : vector<2x16x1xf32> -> vector<2x16x1xf32>
    %50 = vector.broadcast %49 : vector<2x16x1xf32> to vector<2x16x16xf32>
    %51 = arith.mulf %46, %50 : vector<2x16x16xf32>
    %52 = arith.truncf %51 : vector<2x16x16xf32> to vector<2x16x16xbf16>
    "tpu.trace_start"() <{level = 10 : i32, message = "bqk,bkd->bqd"}> : () -> ()
    %cst_19 = arith.constant dense<0.000000e+00> : vector<2x16x32xf32>
    %53 = tpu.matmul %52, %38, %cst_19 {dimension_numbers = #tpu.dot_dimension_numbers<[2], [1], [1], [2], [0, 0, 0, 1, 1, 2], [0], [0]>} : vector<2x16x16xbf16>, vector<2x16x32xbf16>, vector<2x16x32xf32> -> vector<2x16x32xf32>
    "tpu.trace_stop"() : () -> ()
    %54 = vector.shape_cast %53 : vector<2x16x32xf32> to vector<32x32xf32>
    %55 = vector.extract_strided_slice %29 {offsets = [0, 32], sizes = [32, 32], strides = [1, 1]} : vector<32x384xf32> to vector<32x32xf32>
    %56 = vector.shape_cast %55 : vector<32x32xf32> to vector<2x16x32xf32>
    %57 = arith.truncf %56 : vector<2x16x32xf32> to vector<2x16x32xbf16>
    %58 = vector.extract_strided_slice %29 {offsets = [0, 160], sizes = [32, 32], strides = [1, 1]} : vector<32x384xf32> to vector<32x32xf32>
    %59 = vector.shape_cast %58 : vector<32x32xf32> to vector<2x16x32xf32>
    %60 = arith.truncf %59 : vector<2x16x32xf32> to vector<2x16x32xbf16>
    %61 = vector.extract_strided_slice %29 {offsets = [0, 288], sizes = [32, 32], strides = [1, 1]} : vector<32x384xf32> to vector<32x32xf32>
    %62 = vector.shape_cast %61 : vector<32x32xf32> to vector<2x16x32xf32>
    %63 = arith.truncf %62 : vector<2x16x32xf32> to vector<2x16x32xbf16>
    "tpu.trace_start"() <{level = 10 : i32, message = "bqd,bkd->bqk"}> : () -> ()
    %cst_20 = arith.constant dense<0.000000e+00> : vector<2x16x16xf32>
    %64 = tpu.matmul %57, %60, %cst_20 {dimension_numbers = #tpu.dot_dimension_numbers<[2], [2], [1], [1], [0, 0, 0, 1, 1, 1], [0], [0]>} : vector<2x16x32xbf16>, vector<2x16x32xbf16>, vector<2x16x16xf32> -> vector<2x16x16xf32>
    "tpu.trace_stop"() : () -> ()
    %cst_21 = arith.constant 0.176776692 : f32
    %65 = vector.broadcast %cst_21 : f32 to vector<2x16x16xf32>
    %66 = arith.mulf %64, %65 : vector<2x16x16xf32>
    %cst_22 = arith.constant dense<0xFF800000> : vector<2x16xf32>
    %67 = vector.multi_reduction <maximumf>, %66, %cst_22 [2] : vector<2x16x16xf32> to vector<2x16xf32>
    %68 = vector.shape_cast %67 : vector<2x16xf32> to vector<2x16x1xf32>
    %69 = vector.broadcast %68 : vector<2x16x1xf32> to vector<2x16x16xf32>
    %70 = arith.subf %66, %69 : vector<2x16x16xf32>
    %71 = math.exp %70 : vector<2x16x16xf32>
    %cst_23 = arith.constant dense<0.000000e+00> : vector<2x16xf32>
    %72 = vector.multi_reduction <add>, %71, %cst_23 [2] : vector<2x16x16xf32> to vector<2x16xf32>
    %73 = vector.shape_cast %72 : vector<2x16xf32> to vector<2x16x1xf32>
    %74 = tpu.reciprocal %73 {approx = true} : vector<2x16x1xf32> -> vector<2x16x1xf32>
    %75 = vector.broadcast %74 : vector<2x16x1xf32> to vector<2x16x16xf32>
    %76 = arith.mulf %71, %75 : vector<2x16x16xf32>
    %77 = arith.truncf %76 : vector<2x16x16xf32> to vector<2x16x16xbf16>
    "tpu.trace_start"() <{level = 10 : i32, message = "bqk,bkd->bqd"}> : () -> ()
    %cst_24 = arith.constant dense<0.000000e+00> : vector<2x16x32xf32>
    %78 = tpu.matmul %77, %63, %cst_24 {dimension_numbers = #tpu.dot_dimension_numbers<[2], [1], [1], [2], [0, 0, 0, 1, 1, 2], [0], [0]>} : vector<2x16x16xbf16>, vector<2x16x32xbf16>, vector<2x16x32xf32> -> vector<2x16x32xf32>
    "tpu.trace_stop"() : () -> ()
    %79 = vector.shape_cast %78 : vector<2x16x32xf32> to vector<32x32xf32>
    %80 = vector.extract_strided_slice %29 {offsets = [0, 64], sizes = [32, 32], strides = [1, 1]} : vector<32x384xf32> to vector<32x32xf32>
    %81 = vector.shape_cast %80 : vector<32x32xf32> to vector<2x16x32xf32>
    %82 = arith.truncf %81 : vector<2x16x32xf32> to vector<2x16x32xbf16>
    %83 = vector.extract_strided_slice %29 {offsets = [0, 192], sizes = [32, 32], strides = [1, 1]} : vector<32x384xf32> to vector<32x32xf32>
    %84 = vector.shape_cast %83 : vector<32x32xf32> to vector<2x16x32xf32>
    %85 = arith.truncf %84 : vector<2x16x32xf32> to vector<2x16x32xbf16>
    %86 = vector.extract_strided_slice %29 {offsets = [0, 320], sizes = [32, 32], strides = [1, 1]} : vector<32x384xf32> to vector<32x32xf32>
    %87 = vector.shape_cast %86 : vector<32x32xf32> to vector<2x16x32xf32>
    %88 = arith.truncf %87 : vector<2x16x32xf32> to vector<2x16x32xbf16>
    "tpu.trace_start"() <{level = 10 : i32, message = "bqd,bkd->bqk"}> : () -> ()
    %cst_25 = arith.constant dense<0.000000e+00> : vector<2x16x16xf32>
    %89 = tpu.matmul %82, %85, %cst_25 {dimension_numbers = #tpu.dot_dimension_numbers<[2], [2], [1], [1], [0, 0, 0, 1, 1, 1], [0], [0]>} : vector<2x16x32xbf16>, vector<2x16x32xbf16>, vector<2x16x16xf32> -> vector<2x16x16xf32>
    "tpu.trace_stop"() : () -> ()
    %cst_26 = arith.constant 0.176776692 : f32
    %90 = vector.broadcast %cst_26 : f32 to vector<2x16x16xf32>
    %91 = arith.mulf %89, %90 : vector<2x16x16xf32>
    %cst_27 = arith.constant dense<0xFF800000> : vector<2x16xf32>
    %92 = vector.multi_reduction <maximumf>, %91, %cst_27 [2] : vector<2x16x16xf32> to vector<2x16xf32>
    %93 = vector.shape_cast %92 : vector<2x16xf32> to vector<2x16x1xf32>
    %94 = vector.broadcast %93 : vector<2x16x1xf32> to vector<2x16x16xf32>
    %95 = arith.subf %91, %94 : vector<2x16x16xf32>
    %96 = math.exp %95 : vector<2x16x16xf32>
    %cst_28 = arith.constant dense<0.000000e+00> : vector<2x16xf32>
    %97 = vector.multi_reduction <add>, %96, %cst_28 [2] : vector<2x16x16xf32> to vector<2x16xf32>
    %98 = vector.shape_cast %97 : vector<2x16xf32> to vector<2x16x1xf32>
    %99 = tpu.reciprocal %98 {approx = true} : vector<2x16x1xf32> -> vector<2x16x1xf32>
    %100 = vector.broadcast %99 : vector<2x16x1xf32> to vector<2x16x16xf32>
    %101 = arith.mulf %96, %100 : vector<2x16x16xf32>
    %102 = arith.truncf %101 : vector<2x16x16xf32> to vector<2x16x16xbf16>
    "tpu.trace_start"() <{level = 10 : i32, message = "bqk,bkd->bqd"}> : () -> ()
    %cst_29 = arith.constant dense<0.000000e+00> : vector<2x16x32xf32>
    %103 = tpu.matmul %102, %88, %cst_29 {dimension_numbers = #tpu.dot_dimension_numbers<[2], [1], [1], [2], [0, 0, 0, 1, 1, 2], [0], [0]>} : vector<2x16x16xbf16>, vector<2x16x32xbf16>, vector<2x16x32xf32> -> vector<2x16x32xf32>
    "tpu.trace_stop"() : () -> ()
    %104 = vector.shape_cast %103 : vector<2x16x32xf32> to vector<32x32xf32>
    %105 = vector.extract_strided_slice %29 {offsets = [0, 96], sizes = [32, 32], strides = [1, 1]} : vector<32x384xf32> to vector<32x32xf32>
    %106 = vector.shape_cast %105 : vector<32x32xf32> to vector<2x16x32xf32>
    %107 = arith.truncf %106 : vector<2x16x32xf32> to vector<2x16x32xbf16>
    %108 = vector.extract_strided_slice %29 {offsets = [0, 224], sizes = [32, 32], strides = [1, 1]} : vector<32x384xf32> to vector<32x32xf32>
    %109 = vector.shape_cast %108 : vector<32x32xf32> to vector<2x16x32xf32>
    %110 = arith.truncf %109 : vector<2x16x32xf32> to vector<2x16x32xbf16>
    %111 = vector.extract_strided_slice %29 {offsets = [0, 352], sizes = [32, 32], strides = [1, 1]} : vector<32x384xf32> to vector<32x32xf32>
    %112 = vector.shape_cast %111 : vector<32x32xf32> to vector<2x16x32xf32>
    %113 = arith.truncf %112 : vector<2x16x32xf32> to vector<2x16x32xbf16>
    "tpu.trace_start"() <{level = 10 : i32, message = "bqd,bkd->bqk"}> : () -> ()
    %cst_30 = arith.constant dense<0.000000e+00> : vector<2x16x16xf32>
    %114 = tpu.matmul %107, %110, %cst_30 {dimension_numbers = #tpu.dot_dimension_numbers<[2], [2], [1], [1], [0, 0, 0, 1, 1, 1], [0], [0]>} : vector<2x16x32xbf16>, vector<2x16x32xbf16>, vector<2x16x16xf32> -> vector<2x16x16xf32>
    "tpu.trace_stop"() : () -> ()
    %cst_31 = arith.constant 0.176776692 : f32
    %115 = vector.broadcast %cst_31 : f32 to vector<2x16x16xf32>
    %116 = arith.mulf %114, %115 : vector<2x16x16xf32>
    %cst_32 = arith.constant dense<0xFF800000> : vector<2x16xf32>
    %117 = vector.multi_reduction <maximumf>, %116, %cst_32 [2] : vector<2x16x16xf32> to vector<2x16xf32>
    %118 = vector.shape_cast %117 : vector<2x16xf32> to vector<2x16x1xf32>
    %119 = vector.broadcast %118 : vector<2x16x1xf32> to vector<2x16x16xf32>
    %120 = arith.subf %116, %119 : vector<2x16x16xf32>
    %121 = math.exp %120 : vector<2x16x16xf32>
    %cst_33 = arith.constant dense<0.000000e+00> : vector<2x16xf32>
    %122 = vector.multi_reduction <add>, %121, %cst_33 [2] : vector<2x16x16xf32> to vector<2x16xf32>
    %123 = vector.shape_cast %122 : vector<2x16xf32> to vector<2x16x1xf32>
    %124 = tpu.reciprocal %123 {approx = true} : vector<2x16x1xf32> -> vector<2x16x1xf32>
    %125 = vector.broadcast %124 : vector<2x16x1xf32> to vector<2x16x16xf32>
    %126 = arith.mulf %121, %125 : vector<2x16x16xf32>
    %127 = arith.truncf %126 : vector<2x16x16xf32> to vector<2x16x16xbf16>
    "tpu.trace_start"() <{level = 10 : i32, message = "bqk,bkd->bqd"}> : () -> ()
    %cst_34 = arith.constant dense<0.000000e+00> : vector<2x16x32xf32>
    %128 = tpu.matmul %127, %113, %cst_34 {dimension_numbers = #tpu.dot_dimension_numbers<[2], [1], [1], [2], [0, 0, 0, 1, 1, 2], [0], [0]>} : vector<2x16x16xbf16>, vector<2x16x32xbf16>, vector<2x16x32xf32> -> vector<2x16x32xf32>
    "tpu.trace_stop"() : () -> ()
    %129 = vector.shape_cast %128 : vector<2x16x32xf32> to vector<32x32xf32>
    %130 = tpu.concatenate %54, %79, %104, %129 in 1 : vector<32x32xf32>, vector<32x32xf32>, vector<32x32xf32>, vector<32x32xf32> -> vector<32x128xf32>
    %131 = arith.truncf %130 : vector<32x128xf32> to vector<32x128xbf16>
    %c0_35 = arith.constant 0 : index
    %c0_36 = arith.constant 0 : index
    %132 = vector.load %arg6[%c0_35, %c0_36] : memref<128x128xbf16, #tpu.memory_space<vmem>>, vector<128x128xbf16>
    %cst_37 = arith.constant dense<0.000000e+00> : vector<32x128xf32>
    %133 = tpu.matmul %131, %132, %cst_37 {dimension_numbers = #tpu.dot_dimension_numbers<[1], [0], [0], [1], [0, 0, 1, 1], [], []>} : vector<32x128xbf16>, vector<128x128xbf16>, vector<32x128xf32> -> vector<32x128xf32>
    %c0_38 = arith.constant 0 : index
    %c0_39 = arith.constant 0 : index
    %134 = vector.load %arg7[%c0_38, %c0_39] : memref<1x128xf32, #tpu.memory_space<vmem>>, vector<1x128xf32>
    %135 = vector.broadcast %134 : vector<1x128xf32> to vector<32x128xf32>
    %136 = arith.addf %133, %135 : vector<32x128xf32>
    %137 = arith.addf %1, %136 : vector<32x128xf32>
    %c0_40 = arith.constant 0 : index
    %c0_41 = arith.constant 0 : index
    %138 = vector.load %arg8[%c0_40, %c0_41] : memref<1x128xf32, #tpu.memory_space<vmem>>, vector<1x128xf32>
    %c0_42 = arith.constant 0 : index
    %c0_43 = arith.constant 0 : index
    %139 = vector.load %arg9[%c0_42, %c0_43] : memref<1x128xf32, #tpu.memory_space<vmem>>, vector<1x128xf32>
    %cst_44 = arith.constant dense<0.000000e+00> : vector<32xf32>
    %140 = vector.multi_reduction <add>, %137, %cst_44 [1] : vector<32x128xf32> to vector<32xf32>
    %141 = vector.shape_cast %140 : vector<32xf32> to vector<32x1xf32>
    %cst_45 = arith.constant 1.280000e+02 : f32
    %142 = vector.broadcast %cst_45 : f32 to vector<32x1xf32>
    %143 = arith.divf %141, %142 : vector<32x1xf32>
    %144 = vector.broadcast %143 : vector<32x1xf32> to vector<32x128xf32>
    %145 = arith.subf %137, %144 : vector<32x128xf32>
    %146 = arith.mulf %145, %145 : vector<32x128xf32>
    %cst_46 = arith.constant dense<0.000000e+00> : vector<32xf32>
    %147 = vector.multi_reduction <add>, %146, %cst_46 [1] : vector<32x128xf32> to vector<32xf32>
    %148 = vector.shape_cast %147 : vector<32xf32> to vector<32x1xf32>
    %cst_47 = arith.constant 1.280000e+02 : f32
    %149 = vector.broadcast %cst_47 : f32 to vector<32x1xf32>
    %150 = arith.divf %148, %149 : vector<32x1xf32>
    %cst_48 = arith.constant 9.99999974E-6 : f32
    %151 = vector.broadcast %cst_48 : f32 to vector<32x1xf32>
    %152 = arith.addf %150, %151 : vector<32x1xf32>
    %153 = math.rsqrt %152 : vector<32x1xf32>
    %154 = vector.broadcast %153 : vector<32x1xf32> to vector<32x128xf32>
    %155 = arith.mulf %145, %154 : vector<32x128xf32>
    %156 = vector.broadcast %138 : vector<1x128xf32> to vector<32x128xf32>
    %157 = arith.mulf %155, %156 : vector<32x128xf32>
    %158 = vector.broadcast %139 : vector<1x128xf32> to vector<32x128xf32>
    %159 = arith.addf %157, %158 : vector<32x128xf32>
    %160 = arith.truncf %159 : vector<32x128xf32> to vector<32x128xbf16>
    %c0_49 = arith.constant 0 : index
    %c0_50 = arith.constant 0 : index
    %161 = vector.load %arg10[%c0_49, %c0_50] : memref<128x512xbf16, #tpu.memory_space<vmem>>, vector<128x512xbf16>
    %cst_51 = arith.constant dense<0.000000e+00> : vector<32x512xf32>
    %162 = tpu.matmul %160, %161, %cst_51 {dimension_numbers = #tpu.dot_dimension_numbers<[1], [0], [0], [1], [0, 0, 1, 1], [], []>} : vector<32x128xbf16>, vector<128x512xbf16>, vector<32x512xf32> -> vector<32x512xf32>
    %c0_52 = arith.constant 0 : index
    %c0_53 = arith.constant 0 : index
    %163 = vector.load %arg11[%c0_52, %c0_53] : memref<1x512xf32, #tpu.memory_space<vmem>>, vector<1x512xf32>
    %164 = vector.broadcast %163 : vector<1x512xf32> to vector<32x512xf32>
    %165 = arith.addf %162, %164 : vector<32x512xf32>
    %cst_54 = arith.constant 5.000000e-01 : f32
    %166 = vector.broadcast %cst_54 : f32 to vector<32x512xf32>
    %167 = arith.mulf %166, %165 : vector<32x512xf32>
    %cst_55 = arith.constant 4.471500e-02 : f32
    %168 = vector.broadcast %cst_55 : f32 to vector<32x512xf32>
    %169 = arith.mulf %168, %165 : vector<32x512xf32>
    %170 = arith.mulf %169, %165 : vector<32x512xf32>
    %171 = arith.mulf %170, %165 : vector<32x512xf32>
    %172 = arith.addf %165, %171 : vector<32x512xf32>
    %cst_56 = arith.constant 0.797884583 : f32
    %173 = vector.broadcast %cst_56 : f32 to vector<32x512xf32>
    %174 = arith.mulf %173, %172 : vector<32x512xf32>
    %175 = math.tanh %174 : vector<32x512xf32>
    %cst_57 = arith.constant 1.000000e+00 : f32
    %176 = vector.broadcast %cst_57 : f32 to vector<32x512xf32>
    %177 = arith.addf %176, %175 : vector<32x512xf32>
    %178 = arith.mulf %167, %177 : vector<32x512xf32>
    %179 = arith.truncf %178 : vector<32x512xf32> to vector<32x512xbf16>
    %c0_58 = arith.constant 0 : index
    %c0_59 = arith.constant 0 : index
    %180 = vector.load %arg12[%c0_58, %c0_59] : memref<512x128xbf16, #tpu.memory_space<vmem>>, vector<512x128xbf16>
    %cst_60 = arith.constant dense<0.000000e+00> : vector<32x128xf32>
    %181 = tpu.matmul %179, %180, %cst_60 {dimension_numbers = #tpu.dot_dimension_numbers<[1], [0], [0], [1], [0, 0, 1, 1], [], []>} : vector<32x512xbf16>, vector<512x128xbf16>, vector<32x128xf32> -> vector<32x128xf32>
    %c0_61 = arith.constant 0 : index
    %c0_62 = arith.constant 0 : index
    %182 = vector.load %arg13[%c0_61, %c0_62] : memref<1x128xf32, #tpu.memory_space<vmem>>, vector<1x128xf32>
    %183 = vector.broadcast %182 : vector<1x128xf32> to vector<32x128xf32>
    %184 = arith.addf %181, %183 : vector<32x128xf32>
    %185 = arith.addf %137, %184 : vector<32x128xf32>
    %186 = vector.shape_cast %185 : vector<32x128xf32> to vector<2x16x128xf32>
    %c0_63 = arith.constant 0 : index
    %c0_64 = arith.constant 0 : index
    %c0_65 = arith.constant 0 : index
    %187 = vector.load %arg14[%c0_63, %c0_64, %c0_65] : memref<2x16x128xf32, #tpu.memory_space<vmem>>, vector<2x16x128xf32>
    tpu.vector_store %arg14[%c0_63, %c0_64, %c0_65], %186 {strides = array<i32>} : memref<2x16x128xf32, #tpu.memory_space<vmem>>, vector<2x16x128xf32>,
    return
  }
  func.func @transform_0(%arg0: i32) -> (i32, i32, i32) {
    %c0_i32 = arith.constant 0 : i32
    %c0_i32_0 = arith.constant 0 : i32
    %c0_i32_1 = arith.constant 0 : i32
    return %arg0, %c0_i32, %c0_i32_0 : i32, i32, i32
  }
  func.func @transform_1(%arg0: i32) -> (i32, i32) {
    %c0_i32 = arith.constant 0 : i32
    %c0_i32_0 = arith.constant 0 : i32
    %c0_i32_1 = arith.constant 0 : i32
    return %c0_i32, %c0_i32_0 : i32, i32
  }
  func.func @transform_2(%arg0: i32) -> (i32, i32) {
    %c0_i32 = arith.constant 0 : i32
    %c0_i32_0 = arith.constant 0 : i32
    %c0_i32_1 = arith.constant 0 : i32
    return %c0_i32, %c0_i32_0 : i32, i32
  }
  func.func @transform_3(%arg0: i32) -> (i32, i32) {
    %c0_i32 = arith.constant 0 : i32
    %c0_i32_0 = arith.constant 0 : i32
    %c0_i32_1 = arith.constant 0 : i32
    return %c0_i32, %c0_i32_0 : i32, i32
  }
  func.func @transform_4(%arg0: i32) -> (i32, i32) {
    %c0_i32 = arith.constant 0 : i32
    %c0_i32_0 = arith.constant 0 : i32
    %c0_i32_1 = arith.constant 0 : i32
    return %c0_i32, %c0_i32_0 : i32, i32
  }
  func.func @transform_5(%arg0: i32) -> (i32, i32) {
    %c0_i32 = arith.constant 0 : i32
    %c0_i32_0 = arith.constant 0 : i32
    %c0_i32_1 = arith.constant 0 : i32
    return %c0_i32, %c0_i32_0 : i32, i32
  }
  func.func @transform_6(%arg0: i32) -> (i32, i32) {
    %c0_i32 = arith.constant 0 : i32
    %c0_i32_0 = arith.constant 0 : i32
    %c0_i32_1 = arith.constant 0 : i32
    return %c0_i32, %c0_i32_0 : i32, i32
  }
  func.func @transform_7(%arg0: i32) -> (i32, i32) {
    %c0_i32 = arith.constant 0 : i32
    %c0_i32_0 = arith.constant 0 : i32
    %c0_i32_1 = arith.constant 0 : i32
    return %c0_i32, %c0_i32_0 : i32, i32
  }
  func.func @transform_8(%arg0: i32) -> (i32, i32) {
    %c0_i32 = arith.constant 0 : i32
    %c0_i32_0 = arith.constant 0 : i32
    %c0_i32_1 = arith.constant 0 : i32
    return %c0_i32, %c0_i32_0 : i32, i32
  }
  func.func @transform_9(%arg0: i32) -> (i32, i32) {
    %c0_i32 = arith.constant 0 : i32
    %c0_i32_0 = arith.constant 0 : i32
    %c0_i32_1 = arith.constant 0 : i32
    return %c0_i32, %c0_i32_0 : i32, i32
  }
  func.func @transform_10(%arg0: i32) -> (i32, i32) {
    %c0_i32 = arith.constant 0 : i32
    %c0_i32_0 = arith.constant 0 : i32
    %c0_i32_1 = arith.constant 0 : i32
    return %c0_i32, %c0_i32_0 : i32, i32
  }
  func.func @transform_11(%arg0: i32) -> (i32, i32) {
    %c0_i32 = arith.constant 0 : i32
    %c0_i32_0 = arith.constant 0 : i32
    %c0_i32_1 = arith.constant 0 : i32
    return %c0_i32, %c0_i32_0 : i32, i32
  }
  func.func @transform_12(%arg0: i32) -> (i32, i32) {
    %c0_i32 = arith.constant 0 : i32
    %c0_i32_0 = arith.constant 0 : i32
    %c0_i32_1 = arith.constant 0 : i32
    return %c0_i32, %c0_i32_0 : i32, i32
  }
  func.func @transform_13(%arg0: i32) -> (i32, i32, i32) {
    %c0_i32 = arith.constant 0 : i32
    %c0_i32_0 = arith.constant 0 : i32
    %c0_i32_1 = arith.constant 0 : i32
    return %arg0, %c0_i32, %c0_i32_0 : i32, i32, i32
  }
}

</mosaic_0001>

<llo_original>
// kernel: tpu_custom_call.1
$region0: #{tpu_custom_call.1}
  #allocation0 [shape = 'u32[]', space=smem, size = 0x4, offset = 0x4, fixed_abs, tag = 'smem constant byte address 0x4 - core index']
  #allocation1 [shape = 'u32[144,128]{1,0:T(1,128)}', space=vmem, size = 0x12000, scoped, tag = 'internal scratch']
  %s0 = inlined_call_operand.hbm [shape: f32[2,16,128], index: 0, kind: input, shape index: {}]
  %s1 = inlined_call_operand.hbm [shape: f32[1,128], index: 1, kind: input, shape index: {}]
  %s2 = inlined_call_operand.hbm [shape: f32[1,128], index: 2, kind: input, shape index: {}]
  %s3 = inlined_call_operand.hbm [shape: bf16[128,384], index: 3, kind: input, shape index: {}]
  %s4 = inlined_call_operand.vmem [shape: f32[1,384], index: 4, kind: input, shape index: {}]
  %s5 = inlined_call_operand.hbm [shape: bf16[128,128], index: 5, kind: input, shape index: {}]
  %s6 = inlined_call_operand.vmem [shape: f32[1,128], index: 6, kind: input, shape index: {}]
  %s7 = inlined_call_operand.vmem [shape: f32[1,128], index: 7, kind: input, shape index: {}]
  %s8 = inlined_call_operand.vmem [shape: f32[1,128], index: 8, kind: input, shape index: {}]
  %s9 = inlined_call_operand.hbm [shape: bf16[128,512], index: 9, kind: input, shape index: {}]
  %s10 = inlined_call_operand.vmem [shape: f32[1,512], index: 10, kind: input, shape index: {}]
  %s11 = inlined_call_operand.hbm [shape: bf16[512,128], index: 11, kind: input, shape index: {}]
  %s12 = inlined_call_operand.vmem [shape: f32[1,128], index: 12, kind: input, shape index: {}]
  %s13 = inlined_call_operand.hbm [shape: f32[2,16,128], index: 13, kind: output, shape index: {}]
  %s14 = sld [smem:[#allocation0]]
  $region90: #{tpu_custom_call.1} parent=0
    _
  %s16 = ssub.s32 1, %s14
  %s17 = scalar_select 0, %s16, %s14
  $region1: #{tpu_custom_call.1} parent=0
    #allocation2 [shape = 'u8[16384]{0}', space=vmem, size = 0x4000, scoped, tag = 'input window, operand 0, single buffered']
    #allocation3 [shape = 's32[1]{0}', space=sflag, size = 0x4, scoped, tag = 'scoped memory for tpu_custom_call.1']
    #allocation4 [shape = 's32[1]{0}', space=sflag, size = 0x4, scoped, tag = 'scoped memory for tpu_custom_call.1']
    #allocation5 [shape = 'u8[512]{0}', space=vmem, size = 0x400, scoped, tag = 'input window, operand 1, single buffered']
    #allocation6 [shape = 's32[1]{0}', space=sflag, size = 0x4, scoped, tag = 'scoped memory for tpu_custom_call.1']
    #allocation7 [shape = 'u8[512]{0}', space=vmem, size = 0x400, scoped, tag = 'input window, operand 2, single buffered']
    #allocation8 [shape = 'u8[98304]{0}', space=vmem, size = 0x18000, scoped, tag = 'input window, operand 3, single buffered']
    #allocation9 [shape = 's32[1]{0}', space=sflag, size = 0x4, scoped, tag = 'scoped memory for tpu_custom_call.1']
    #allocation10 [shape = 'u8[32768]{0}', space=vmem, size = 0x8000, scoped, tag = 'input window, operand 5, single buffered']
    #allocation11 [shape = 'u8[131072]{0}', space=vmem, size = 0x20000, scoped, tag = 'input window, operand 9, single buffered']
    #allocation12 [shape = 's32[1]{0}', space=sflag, size = 0x4, scoped, tag = 'scoped memory for tpu_custom_call.1']
    #allocation13 [shape = 'u8[131072]{0}', space=vmem, size = 0x20000, scoped, tag = 'input window, operand 11, single buffered']
    #allocation14 [shape = 'u8[16384]{0}', space=vmem, size = 0x4000, scoped, tag = 'output window, operand 0, single buffered']
    %18 = vsyncpa [#allocation3], 0
    %19 = vsyncpa [#allocation6], 0
    %20 = vsyncpa [#allocation9], 0
    %21 = vsyncpa [#allocation12], 0
    %22 = vsyncpa [#allocation4], 0
    // Predicated region
    $region2: #{tpu_custom_call.1} parent=1 // pred_check
      _
    $region3: #{tpu_custom_call.1} parent=1 // pred_check_branch
      %24 = sbr.rel (0) target = $region5
    $region4: #{tpu_custom_call.1} parent=1 // pred_region
      %s26 = ssub.s32 512, 512
      %27 = vsyncadd [#allocation3], %s26
      %s28 = sshll.u32 [#allocation2], 4
      %s29 = int_to_ptr.vmem [resolvable:$true] %s28
      %34 = dma.hbm_to_vmem [thread:$0]  %s0, 512, %s29, [#allocation3], 128, 128, 8
    $region5: #{tpu_custom_call.1} parent=1 // pred_fallthru
      _
    // Predicated region
    $region6: #{tpu_custom_call.1} parent=1 // pred_check
      _
    $region7: #{tpu_custom_call.1} parent=1 // pred_check_branch
      %36 = sbr.rel (0) target = $region9
    $region8: #{tpu_custom_call.1} parent=1 // pred_region
      %s38 = ssub.s32 16, 16
      %39 = vsyncadd [#allocation6], %s38
      %s41 = sshll.u32 [#allocation5], 4
      %s42 = int_to_ptr.vmem [resolvable:$true] %s41
      %44 = dma.hbm_to_vmem [thread:$0]  %s1, 16, %s42, [#allocation6]
    $region9: #{tpu_custom_call.1} parent=1 // pred_fallthru
      _
    // Predicated region
    $region10: #{tpu_custom_call.1} parent=1 // pred_check
      _
    $region11: #{tpu_custom_call.1} parent=1 // pred_check_branch
      %46 = sbr.rel (0) target = $region13
    $region12: #{tpu_custom_call.1} parent=1 // pred_region
      %s48 = ssub.s32 16, 16
      %49 = vsyncadd [#allocation6], %s48
      %s51 = sshll.u32 [#allocation7], 4
      %s52 = int_to_ptr.vmem [resolvable:$true] %s51
      %54 = dma.hbm_to_vmem [thread:$0]  %s2, 16, %s52, [#allocation6]
    $region13: #{tpu_custom_call.1} parent=1 // pred_fallthru
      _
    // Predicated region
    $region14: #{tpu_custom_call.1} parent=1 // pred_check
      _
    $region15: #{tpu_custom_call.1} parent=1 // pred_check_branch
      %56 = sbr.rel (0) target = $region17
    $region16: #{tpu_custom_call.1} parent=1 // pred_region
      %s58 = ssub.s32 3072, 3072
      %59 = vsyncadd [#allocation9], %s58
      %s60 = sshll.u32 [#allocation8], 4
      %s61 = int_to_ptr.vmem [resolvable:$true] %s60
      %66 = dma.hbm_to_vmem [thread:$0]  %s3, 3072, %s61, [#allocation9], 192, 192, 12
    $region17: #{tpu_custom_call.1} parent=1 // pred_fallthru
      _
    // Predicated region
    $region18: #{tpu_custom_call.1} parent=1 // pred_check
      _
    $region19: #{tpu_custom_call.1} parent=1 // pred_check_branch
      %68 = sbr.rel (0) target = $region21
    $region20: #{tpu_custom_call.1} parent=1 // pred_region
      _
    $region21: #{tpu_custom_call.1} parent=1 // pred_fallthru
      _
    // Predicated region
    $region22: #{tpu_custom_call.1} parent=1 // pred_check
      _
    $region23: #{tpu_custom_call.1} parent=1 // pred_check_branch
      %70 = sbr.rel (0) target = $region25
    $region24: #{tpu_custom_call.1} parent=1 // pred_region
      %s72 = ssub.s32 1024, 1024
      %73 = vsyncadd [#allocation9], %s72
      %s74 = sshll.u32 [#allocation10], 4
      %s75 = int_to_ptr.vmem [resolvable:$true] %s74
      %80 = dma.hbm_to_vmem [thread:$0]  %s5, 1024, %s75, [#allocation9], 64, 64, 4
    $region25: #{tpu_custom_call.1} parent=1 // pred_fallthru
      _
    // Predicated region
    $region26: #{tpu_custom_call.1} parent=1 // pred_check
      _
    $region27: #{tpu_custom_call.1} parent=1 // pred_check_branch
      %82 = sbr.rel (0) target = $region29
    $region28: #{tpu_custom_call.1} parent=1 // pred_region
      _
    $region29: #{tpu_custom_call.1} parent=1 // pred_fallthru
      _
    // Predicated region
    $region30: #{tpu_custom_call.1} parent=1 // pred_check
      _
    $region31: #{tpu_custom_call.1} parent=1 // pred_check_branch
      %84 = sbr.rel (0) target = $region33
    $region32: #{tpu_custom_call.1} parent=1 // pred_region
      _
    $region33: #{tpu_custom_call.1} parent=1 // pred_fallthru
      _
    // Predicated region
    $region34: #{tpu_custom_call.1} parent=1 // pred_check
      _
    $region35: #{tpu_custom_call.1} parent=1 // pred_check_branch
      %86 = sbr.rel (0) target = $region37
    $region36: #{tpu_custom_call.1} parent=1 // pred_region
      _
    $region37: #{tpu_custom_call.1} parent=1 // pred_fallthru
      _
    // Predicated region
    $region38: #{tpu_custom_call.1} parent=1 // pred_check
      _
    $region39: #{tpu_custom_call.1} parent=1 // pred_check_branch
      %88 = sbr.rel (0) target = $region41
    $region40: #{tpu_custom_call.1} parent=1 // pred_region
      %s90 = ssub.s32 4096, 4096
      %91 = vsyncadd [#allocation12], %s90
      %s92 = sshll.u32 [#allocation11], 4
      %s93 = int_to_ptr.vmem [resolvable:$true] %s92
      %98 = dma.hbm_to_vmem [thread:$0]  %s9, 4096, %s93, [#allocation12], 256, 256, 16
    $region41: #{tpu_custom_call.1} parent=1 // pred_fallthru
      _
    // Predicated region
    $region42: #{tpu_custom_call.1} parent=1 // pred_check
      _
    $region43: #{tpu_custom_call.1} parent=1 // pred_check_branch
      %100 = sbr.rel (0) target = $region45
    $region44: #{tpu_custom_call.1} parent=1 // pred_region
      _
    $region45: #{tpu_custom_call.1} parent=1 // pred_fallthru
      _
    // Predicated region
    $region46: #{tpu_custom_call.1} parent=1 // pred_check
      _
    $region47: #{tpu_custom_call.1} parent=1 // pred_check_branch
      %102 = sbr.rel (0) target = $region49
    $region48: #{tpu_custom_call.1} parent=1 // pred_region
      %s104 = ssub.s32 4096, 4096
      %105 = vsyncadd [#allocation12], %s104
      %s106 = sshll.u32 [#allocation13], 4
      %s107 = int_to_ptr.vmem [resolvable:$true] %s106
      %112 = dma.hbm_to_vmem [thread:$0]  %s11, 4096, %s107, [#allocation12], 64, 64, 4
    $region49: #{tpu_custom_call.1} parent=1 // pred_fallthru
      _
    // Predicated region
    $region50: #{tpu_custom_call.1} parent=1 // pred_check
      _
    $region51: #{tpu_custom_call.1} parent=1 // pred_check_branch
      %114 = sbr.rel (0) target = $region53
    $region52: #{tpu_custom_call.1} parent=1 // pred_region
      _
    $region53: #{tpu_custom_call.1} parent=1 // pred_fallthru
      _
    // Predicated region
    $region54: #{tpu_custom_call.1} parent=1 // pred_check
      _
    $region55: #{tpu_custom_call.1} parent=1 // pred_check_branch
      %116 = sbr.rel (0) target = $region57
    $region56: #{tpu_custom_call.1} parent=1 // pred_region
      %117 = dma.done [#allocation3], 512
    $region57: #{tpu_custom_call.1} parent=1 // pred_fallthru
      _
    // Predicated region
    $region58: #{tpu_custom_call.1} parent=1 // pred_check
      _
    $region59: #{tpu_custom_call.1} parent=1 // pred_check_branch
      %119 = sbr.rel (0) target = $region61
    $region60: #{tpu_custom_call.1} parent=1 // pred_region
      %120 = dma.done [#allocation6], 16
    $region61: #{tpu_custom_call.1} parent=1 // pred_fallthru
      _
    // Predicated region
    $region62: #{tpu_custom_call.1} parent=1 // pred_check
      _
    $region63: #{tpu_custom_call.1} parent=1 // pred_check_branch
      %122 = sbr.rel (0) target = $region65
    $region64: #{tpu_custom_call.1} parent=1 // pred_region
      %123 = dma.done [#allocation6], 16
    $region65: #{tpu_custom_call.1} parent=1 // pred_fallthru
      _
    // Predicated region
    $region66: #{tpu_custom_call.1} parent=1 // pred_check
      _
    $region67: #{tpu_custom_call.1} parent=1 // pred_check_branch
      %125 = sbr.rel (0) target = $region69
    $region68: #{tpu_custom_call.1} parent=1 // pred_region
      %126 = dma.done [#allocation9], 3072
    $region69: #{tpu_custom_call.1} parent=1 // pred_fallthru
      _
    // Predicated region
    $region70: #{tpu_custom_call.1} parent=1 // pred_check
      _
    $region71: #{tpu_custom_call.1} parent=1 // pred_check_branch
      %128 = sbr.rel (0) target = $region73
    $region72: #{tpu_custom_call.1} parent=1 // pred_region
      %129 = dma.done [#allocation9], 1024
    $region73: #{tpu_custom_call.1} parent=1 // pred_fallthru
      _
    // Predicated region
    $region74: #{tpu_custom_call.1} parent=1 // pred_check
      _
    $region75: #{tpu_custom_call.1} parent=1 // pred_check_branch
      %131 = sbr.rel (0) target = $region77
    $region76: #{tpu_custom_call.1} parent=1 // pred_region
      %132 = dma.done [#allocation12], 4096
    $region77: #{tpu_custom_call.1} parent=1 // pred_fallthru
      _
    // Predicated region
    $region78: #{tpu_custom_call.1} parent=1 // pred_check
      _
    $region79: #{tpu_custom_call.1} parent=1 // pred_check_branch
      %134 = sbr.rel (0) target = $region81
    $region80: #{tpu_custom_call.1} parent=1 // pred_region
      %135 = dma.done [#allocation12], 4096
    $region81: #{tpu_custom_call.1} parent=1 // pred_fallthru
      _
    %v137 = vld [vmem:[#allocation2] sm:$0xff]
    %v138 = vld [vmem:[#allocation2 + $0x8] sm:$0xff]
    %v139 = vld [vmem:[#allocation2 + $0x10] sm:$0xff]
    %v140 = vld [vmem:[#allocation2 + $0x18] sm:$0xff]
    %v141 = vld [vmem:[#allocation5] sm:$0x1]
    %v142 = vld [vmem:[#allocation7] sm:$0x1]
    %143 = vadd.xlane.f32.xlu0 %v137
    %v144 = vpop.xlane.xlu0 %143
    %145 = vadd.xlane.f32.xlu0 %v138
    %v146 = vpop.xlane.xlu0 %145
    %147 = vadd.xlane.f32.xlu0 %v139
    %v148 = vpop.xlane.xlu0 %147
    %149 = vadd.xlane.f32.xlu0 %v140
    %v150 = vpop.xlane.xlu0 %149
    %v151 = vrcp.pop 128.0
    %v152 = vmul.f32 %v144, %v151
    %v153 = vmul.f32 %v146, %v151
    %v154 = vmul.f32 %v148, %v151
    %v155 = vmul.f32 %v150, %v151
    %v156 = vsub.f32 %v137, %v152
    %v157 = vsub.f32 %v138, %v153
    %v158 = vsub.f32 %v139, %v154
    %v159 = vsub.f32 %v140, %v155
    %v160 = vmul.f32 %v156, %v156
    %v161 = vmul.f32 %v157, %v157
    %v162 = vmul.f32 %v158, %v158
    %v163 = vmul.f32 %v159, %v159
    %164 = vadd.xlane.f32.xlu0 %v160
    %v165 = vpop.xlane.xlu0 %164
    %166 = vadd.xlane.f32.xlu0 %v161
    %v167 = vpop.xlane.xlu0 %166
    %168 = vadd.xlane.f32.xlu0 %v162
    %v169 = vpop.xlane.xlu0 %168
    %170 = vadd.xlane.f32.xlu0 %v163
    %v171 = vpop.xlane.xlu0 %170
    %v172 = vmul.f32 %v165, %v151
    %v173 = vmul.f32 %v167, %v151
    %v174 = vmul.f32 %v169, %v151
    %v175 = vmul.f32 %v171, %v151
    %v176 = vadd.f32 %v172, 1e-05
    %v177 = vadd.f32 %v173, 1e-05
    %v178 = vadd.f32 %v174, 1e-05
    %v179 = vadd.f32 %v175, 1e-05
    %v180 = vrsqrt.pop %v176
    %v181 = vrsqrt.pop %v177
    %v182 = vrsqrt.pop %v178
    %v183 = vrsqrt.pop %v179
    %v184 = vmul.f32 %v156, %v180
    %v185 = vmul.f32 %v157, %v181
    %v186 = vmul.f32 %v158, %v182
    %v187 = vmul.f32 %v159, %v183
    %v189 = vlaneseq
    %v190 = vshrl.u32 %v189, 7
    %v191 = vsub.s32 0, %v190
    %v192 = vrot.slane %v141, %v191
    %v194 = vmul.f32 %v184, %v192
    %v195 = vmul.f32 %v185, %v192
    %v196 = vmul.f32 %v186, %v192
    %v197 = vmul.f32 %v187, %v192
    %v199 = vlaneseq
    %v200 = vshrl.u32 %v199, 7
    %v201 = vsub.s32 0, %v200
    %v202 = vrot.slane %v142, %v201
    %v204 = vadd.f32 %v194, %v202
    %v205 = vadd.f32 %v195, %v202
    %v206 = vadd.f32 %v196, %v202
    %v207 = vadd.f32 %v197, %v202
    %v208 = vpack.c.bf16 %v205, %v204
    %v209 = vpack.c.bf16 %v207, %v206
    %v210 = vld [vmem:[#allocation8] sm:$0xff]
    %v211 = vld [vmem:[#allocation8 + $0x8] sm:$0xf]
    %v212 = vld [vmem:[#allocation8 + $0xc] sm:$0xff]
    %v213 = vld [vmem:[#allocation8 + $0x14] sm:$0xf]
    %v214 = vld [vmem:[#allocation8 + $0x18] sm:$0xff]
    %v215 = vld [vmem:[#allocation8 + $0x20] sm:$0xf]
    %v216 = vld [vmem:[#allocation8 + $0x24] sm:$0xff]
    %v217 = vld [vmem:[#allocation8 + $0x2c] sm:$0xf]
    %v218 = vld [vmem:[#allocation8 + $0x30] sm:$0xff]
    %v219 = vld [vmem:[#allocation8 + $0x38] sm:$0xf]
    %v220 = vld [vmem:[#allocation8 + $0x3c] sm:$0xff]
    %v221 = vld [vmem:[#allocation8 + $0x44] sm:$0xf]
    %v222 = vld [vmem:[#allocation8 + $0x48] sm:$0xff]
    %v223 = vld [vmem:[#allocation8 + $0x50] sm:$0xf]
    %v224 = vld [vmem:[#allocation8 + $0x54] sm:$0xff]
    %v225 = vld [vmem:[#allocation8 + $0x5c] sm:$0xf]
    %v226 = vld [vmem:[#allocation8 + $0x60] sm:$0xff]
    %v227 = vld [vmem:[#allocation8 + $0x68] sm:$0xf]
    %v228 = vld [vmem:[#allocation8 + $0x6c] sm:$0xff]
    %v229 = vld [vmem:[#allocation8 + $0x74] sm:$0xf]
    %v230 = vld [vmem:[#allocation8 + $0x78] sm:$0xff]
    %v231 = vld [vmem:[#allocation8 + $0x80] sm:$0xf]
    %v232 = vld [vmem:[#allocation8 + $0x84] sm:$0xff]
    %v233 = vld [vmem:[#allocation8 + $0x8c] sm:$0xf]
    %v234 = vld [vmem:[#allocation8 + $0x90] sm:$0xff]
    %v235 = vld [vmem:[#allocation8 + $0x98] sm:$0xf]
    %v236 = vld [vmem:[#allocation8 + $0x9c] sm:$0xff]
    %v237 = vld [vmem:[#allocation8 + $0xa4] sm:$0xf]
    %v238 = vld [vmem:[#allocation8 + $0xa8] sm:$0xff]
    %v239 = vld [vmem:[#allocation8 + $0xb0] sm:$0xf]
    %v240 = vld [vmem:[#allocation8 + $0xb4] sm:$0xff]
    %v241 = vld [vmem:[#allocation8 + $0xbc] sm:$0xf]
    %v242 = vld [vmem:[%s4] sm:$0x7]
    %v244 = vlaneseq
    %v245 = vshrl.u32 %v244, 7
    %v246 = vsub.s32 0, %v245
    %v247 = vrot.slane %v242, %v246
    %v248 = vlaneseq
    %v249 = vshrl.u32 %v248, 7
    %v250 = vsub.s32 1, %v249
    %v251 = vrot.slane %v242, %v250
    %v252 = vlaneseq
    %v253 = vshrl.u32 %v252, 7
    %v254 = vsub.s32 2, %v253
    %v255 = vrot.slane %v242, %v254
    %v291 = vunpack.c.l.b16 %v210
    %v292 = vunpack.c.h.b16 %v210
    %v293 = vunpack.c.l.b16 %v211
    %v294 = vunpack.c.l.b16 %v212
    %v295 = vunpack.c.h.b16 %v212
    %v296 = vunpack.c.l.b16 %v213
    %v297 = vunpack.c.l.b16 %v214
    %v298 = vunpack.c.h.b16 %v214
    %v299 = vunpack.c.l.b16 %v215
    %v300 = vunpack.c.l.b16 %v216
    %v301 = vunpack.c.h.b16 %v216
    %v302 = vunpack.c.l.b16 %v217
    %v303 = vunpack.c.l.b16 %v218
    %v304 = vunpack.c.h.b16 %v218
    %v305 = vunpack.c.l.b16 %v219
    %v306 = vunpack.c.l.b16 %v220
    %v307 = vunpack.c.h.b16 %v220
    %v308 = vunpack.c.l.b16 %v221
    %v309 = vunpack.c.l.b16 %v222
    %v310 = vunpack.c.h.b16 %v222
    %v311 = vunpack.c.l.b16 %v223
    %v312 = vunpack.c.l.b16 %v224
    %v313 = vunpack.c.h.b16 %v224
    %v314 = vunpack.c.l.b16 %v225
    %v315 = vunpack.c.l.b16 %v226
    %v316 = vunpack.c.h.b16 %v226
    %v317 = vunpack.c.l.b16 %v227
    %v318 = vunpack.c.l.b16 %v228
    %v319 = vunpack.c.h.b16 %v228
    %v320 = vunpack.c.l.b16 %v229
    %v321 = vunpack.c.l.b16 %v230
    %v322 = vunpack.c.h.b16 %v230
    %v323 = vunpack.c.l.b16 %v231
    %v324 = vunpack.c.l.b16 %v232
    %v325 = vunpack.c.h.b16 %v232
    %v326 = vunpack.c.l.b16 %v233
    %v327 = vunpack.c.l.b16 %v234
    %v328 = vunpack.c.h.b16 %v234
    %v329 = vunpack.c.l.b16 %v235
    %v330 = vunpack.c.l.b16 %v236
    %v331 = vunpack.c.h.b16 %v236
    %v332 = vunpack.c.l.b16 %v237
    %v333 = vunpack.c.l.b16 %v238
    %v334 = vunpack.c.h.b16 %v238
    %v335 = vunpack.c.l.b16 %v239
    %v336 = vunpack.c.l.b16 %v240
    %v337 = vunpack.c.h.b16 %v240
    %v338 = vunpack.c.l.b16 %v241
    %v339 = vpack.c.b16 %v294, %v291
    %v340 = vpack.c.b16 %v295, %v292
    %v341 = vpack.c.b16 %v296, %v293
    %v342 = vpack.c.b16 %v300, %v297
    %v343 = vpack.c.b16 %v301, %v298
    %v344 = vpack.c.b16 %v302, %v299
    %v345 = vpack.c.b16 %v306, %v303
    %v346 = vpack.c.b16 %v307, %v304
    %v347 = vpack.c.b16 %v308, %v305
    %v348 = vpack.c.b16 %v312, %v309
    %v349 = vpack.c.b16 %v313, %v310
    %v350 = vpack.c.b16 %v314, %v311
    %v351 = vpack.c.b16 %v318, %v315
    %v352 = vpack.c.b16 %v319, %v316
    %v353 = vpack.c.b16 %v320, %v317
    %v354 = vpack.c.b16 %v324, %v321
    %v355 = vpack.c.b16 %v325, %v322
    %v356 = vpack.c.b16 %v326, %v323
    %v357 = vpack.c.b16 %v330, %v327
    %v358 = vpack.c.b16 %v331, %v328
    %v359 = vpack.c.b16 %v332, %v329
    %v360 = vpack.c.b16 %v336, %v333
    %v361 = vpack.c.b16 %v337, %v334
    %v362 = vpack.c.b16 %v338, %v335
    %387 = vmatprep.subr.bf16.mxu0 %v361
    %388 = vmatpush1.bf16.msra.mxu0 %v360
    %389 = vmatprep.subr.bf16.mxu0 %v358
    %390 = vmatpush1.bf16.msra.mxu0 %v357
    %391 = vmatprep.subr.bf16.mxu0 %v355
    %392 = vmatpush1.bf16.msra.mxu0 %v354
    %393 = vmatprep.subr.bf16.mxu0 %v352
    %394 = vmatpush1.bf16.msra.mxu0 %v351
    %395 = vmatprep.subr.bf16.mxu0 %v349
    %396 = vmatpush1.bf16.msra.mxu0 %v348
    %397 = vmatprep.subr.bf16.mxu0 %v346
    %398 = vmatpush1.bf16.msra.mxu0 %v345
    %399 = vmatprep.subr.bf16.mxu0 %v343
    %400 = vmatpush1.bf16.msra.mxu0 %v342
    %401 = vmatprep.subr.bf16.mxu0 %v340
    %402 = vmatpush1.bf16.msra.mxu0 %v339
    %403 = vmatprep.subr.bf16.mxu0 0
    %404 = vmatpush2.bf16.msra.mxu0 0
    %405 = vmatprep.subr.bf16.mxu0 0
    %406 = vmatpush2.bf16.msra.mxu0 0
    %407 = vmatprep.subr.bf16.mxu0 0
    %408 = vmatpush2.bf16.msra.mxu0 0
    %409 = vmatprep.subr.bf16.mxu0 0
    %410 = vmatpush2.bf16.msra.mxu0 0
    %411 = vmatprep.subr.bf16.mxu0 0
    %412 = vmatpush2.bf16.msra.mxu0 0
    %413 = vmatprep.subr.bf16.mxu0 0
    %414 = vmatpush2.bf16.msra.mxu0 0
    %415 = vmatprep.subr.bf16.mxu0 0
    %416 = vmatpush2.bf16.msra.mxu0 0
    %417 = vmatprep.subr.bf16.mxu0 0
    %418 = vmatpush2.bf16.msra.mxu0 0
    %419 = vmatprep.mubr.bf16.mxu0 0
    %420 = vmatmul.mubr.bf16.gmra.mxu0 %v208
    %v421 = vpop.f32.mrf.mxu0
    %v422 = vadd.f32 %v247, %v421
    %v423 = vpop.f32.mrf.mxu0
    %v424 = vadd.f32 %v251, %v423
    %v425 = vpop.f32.mrf.mxu0
    %v426 = vadd.f32 %v247, %v425
    %v427 = vpop.f32.mrf.mxu0
    %v428 = vadd.f32 %v251, %v427
    %429 = vmatprep.mubr.bf16.mxu0 0
    %430 = vmatmul.mubr.bf16.gmra.mxu0 %v209
    %v431 = vpop.f32.mrf.mxu0
    %v432 = vadd.f32 %v247, %v431
    %v433 = vpop.f32.mrf.mxu0
    %v434 = vadd.f32 %v251, %v433
    %v435 = vpop.f32.mrf.mxu0
    %v436 = vadd.f32 %v247, %v435
    %v437 = vpop.f32.mrf.mxu0
    %v438 = vadd.f32 %v251, %v437
    %439 = vdwg.mxu0
    %440 = vmatprep.subr.bf16.mxu0 0
    %441 = vmatpush1.bf16.msra.mxu0 %v362
    %442 = vmatprep.subr.bf16.mxu0 0
    %443 = vmatpush1.bf16.msra.mxu0 %v359
    %444 = vmatprep.subr.bf16.mxu0 0
    %445 = vmatpush1.bf16.msra.mxu0 %v356
    %446 = vmatprep.subr.bf16.mxu0 0
    %447 = vmatpush1.bf16.msra.mxu0 %v353
    %448 = vmatprep.subr.bf16.mxu0 0
    %449 = vmatpush1.bf16.msra.mxu0 %v350
    %450 = vmatprep.subr.bf16.mxu0 0
    %451 = vmatpush1.bf16.msra.mxu0 %v347
    %452 = vmatprep.subr.bf16.mxu0 0
    %453 = vmatpush1.bf16.msra.mxu0 %v344
    %454 = vmatprep.subr.bf16.mxu0 0
    %455 = vmatpush1.bf16.msra.mxu0 %v341
    %456 = vmatprep.subr.bf16.mxu0 0
    %457 = vmatpush2.bf16.msra.mxu0 0
    %458 = vmatprep.subr.bf16.mxu0 0
    %459 = vmatpush2.bf16.msra.mxu0 0
    %460 = vmatprep.subr.bf16.mxu0 0
    %461 = vmatpush2.bf16.msra.mxu0 0
    %462 = vmatprep.subr.bf16.mxu0 0
    %463 = vmatpush2.bf16.msra.mxu0 0
    %464 = vmatprep.subr.bf16.mxu0 0
    %465 = vmatpush2.bf16.msra.mxu0 0
    %466 = vmatprep.subr.bf16.mxu0 0
    %467 = vmatpush2.bf16.msra.mxu0 0
    %468 = vmatprep.subr.bf16.mxu0 0
    %469 = vmatpush2.bf16.msra.mxu0 0
    %470 = vmatprep.subr.bf16.mxu0 0
    %471 = vmatpush2.bf16.msra.mxu0 0
    %472 = vmatprep.mubr.bf16.mxu0 0
    %473 = vmatmul.mubr.bf16.gmra.mxu0 %v208
    %v474 = vpop.f32.mrf.mxu0
    %v475 = vadd.f32 %v255, %v474
    %v476 = vpop.f32.mrf.mxu0
    %v477 = vpop.f32.mrf.mxu0
    %v478 = vadd.f32 %v255, %v477
    %v479 = vpop.f32.mrf.mxu0
    %480 = vmatprep.mubr.bf16.mxu0 0
    %481 = vmatmul.mubr.bf16.gmra.mxu0 %v209
    %v482 = vpop.f32.mrf.mxu0
    %v483 = vadd.f32 %v255, %v482
    %v484 = vpop.f32.mrf.mxu0
    %v485 = vpop.f32.mrf.mxu0
    %v486 = vadd.f32 %v255, %v485
    %v487 = vpop.f32.mrf.mxu0
    %488 = vdwg.mxu0
    %v489 = vpack.c.bf16 %v426, %v422
    %v490 = vpack.c.bf16 %v436, %v432
    %v491 = vpack.c.bf16 %v428, %v424
    %v492 = vpack.c.bf16 %v438, %v434
    %v493 = vpack.c.bf16 %v478, %v475
    %v494 = vpack.c.bf16 %v486, %v483
    %vm495 = vcmask 261120
    %v497 = vsel %vm495, %v489, 0
    %v500 = vsel %vm495, %v491, 0
    %502 = vmatprep.subr.bf16.mxu0 0
    %503 = vmatpush1.bf16.xpose.msra.mxu0 0
    %504 = vmatprep.subr.bf16.mxu0 0
    %505 = vmatpush1.bf16.xpose.msra.mxu0 0
    %506 = vmatprep.subr.bf16.mxu0 0
    %507 = vmatpush1.bf16.xpose.msra.mxu0 0
    %508 = vmatprep.subr.bf16.mxu0 0
    %509 = vmatpush1.bf16.xpose.msra.mxu0 0
    %510 = vmatprep.subr.bf16.mxu0 0
    %511 = vmatpush1.bf16.xpose.msra.mxu0 0
    %512 = vmatprep.subr.bf16.mxu0 0
    %513 = vmatpush1.bf16.xpose.msra.mxu0 0
    %514 = vmatprep.subr.bf16.mxu0 0
    %515 = vmatpush1.bf16.xpose.msra.mxu0 0
    %516 = vmatprep.subr.bf16.mxu0 0
    %517 = vmatpush1.bf16.xpose.msra.mxu0 %v500
    %518 = vmatprep.subr.bf16.mxu0 0
    %519 = vmatpush2.bf16.xpose.msra.mxu0 0
    %520 = vmatprep.subr.bf16.mxu0 0
    %521 = vmatpush2.bf16.xpose.msra.mxu0 0
    %522 = vmatprep.subr.bf16.mxu0 0
    %523 = vmatpush2.bf16.xpose.msra.mxu0 0
    %524 = vmatprep.subr.bf16.mxu0 0
    %525 = vmatpush2.bf16.xpose.msra.mxu0 0
    %526 = vmatprep.subr.bf16.mxu0 0
    %527 = vmatpush2.bf16.xpose.msra.mxu0 0
    %528 = vmatprep.subr.bf16.mxu0 0
    %529 = vmatpush2.bf16.xpose.msra.mxu0 0
    %530 = vmatprep.subr.bf16.mxu0 0
    %531 = vmatpush2.bf16.xpose.msra.mxu0 0
    %532 = vmatprep.subr.bf16.mxu0 0
    %533 = vmatpush2.bf16.xpose.msra.mxu0 0
    %534 = vmatprep.mubr.bf16.mxu0 0
    %535 = vmatmul.mubr.bf16.gmra.mxu0 %v497
    %v536 = vpop.f32.mrf.mxu0
    %v537 = vadd.f32 0.0, %v536
    %v538 = vpop.f32.mrf.mxu0
    %v539 = vpop.f32.mrf.mxu0
    %v540 = vadd.f32 0.0, %v539
    %v541 = vpop.f32.mrf.mxu0
    %542 = vdwg.mxu0
    %v544 = vsel %vm495, %v490, 0
    %v547 = vsel %vm495, %v492, 0
    %549 = vmatprep.subr.bf16.mxu0 0
    %550 = vmatpush1.bf16.xpose.msra.mxu0 0
    %551 = vmatprep.subr.bf16.mxu0 0
    %552 = vmatpush1.bf16.xpose.msra.mxu0 0
    %553 = vmatprep.subr.bf16.mxu0 0
    %554 = vmatpush1.bf16.xpose.msra.mxu0 0
    %555 = vmatprep.subr.bf16.mxu0 0
    %556 = vmatpush1.bf16.xpose.msra.mxu0 0
    %557 = vmatprep.subr.bf16.mxu0 0
    %558 = vmatpush1.bf16.xpose.msra.mxu0 0
    %559 = vmatprep.subr.bf16.mxu0 0
    %560 = vmatpush1.bf16.xpose.msra.mxu0 0
    %561 = vmatprep.subr.bf16.mxu0 0
    %562 = vmatpush1.bf16.xpose.msra.mxu0 0
    %563 = vmatprep.subr.bf16.mxu0 0
    %564 = vmatpush1.bf16.xpose.msra.mxu0 %v547
    %565 = vmatprep.subr.bf16.mxu0 0
    %566 = vmatpush2.bf16.xpose.msra.mxu0 0
    %567 = vmatprep.subr.bf16.mxu0 0
    %568 = vmatpush2.bf16.xpose.msra.mxu0 0
    %569 = vmatprep.subr.bf16.mxu0 0
    %570 = vmatpush2.bf16.xpose.msra.mxu0 0
    %571 = vmatprep.subr.bf16.mxu0 0
    %572 = vmatpush2.bf16.xpose.msra.mxu0 0
    %573 = vmatprep.subr.bf16.mxu0 0
    %574 = vmatpush2.bf16.xpose.msra.mxu0 0
    %575 = vmatprep.subr.bf16.mxu0 0
    %576 = vmatpush2.bf16.xpose.msra.mxu0 0
    %577 = vmatprep.subr.bf16.mxu0 0
    %578 = vmatpush2.bf16.xpose.msra.mxu0 0
    %579 = vmatprep.subr.bf16.mxu0 0
    %580 = vmatpush2.bf16.xpose.msra.mxu0 0
    %581 = vmatprep.mubr.bf16.mxu0 0
    %582 = vmatmul.mubr.bf16.gmra.mxu0 %v544
    %v583 = vpop.f32.mrf.mxu0
    %v584 = vadd.f32 0.0, %v583
    %v585 = vpop.f32.mrf.mxu0
    %v586 = vpop.f32.mrf.mxu0
    %v587 = vadd.f32 0.0, %v586
    %v588 = vpop.f32.mrf.mxu0
    %589 = vdwg.mxu0
    %v590 = vmul.f32 %v537, 0.17677669
    %v591 = vmul.f32 %v540, 0.17677669
    %v592 = vmul.f32 %v584, 0.17677669
    %v593 = vmul.f32 %v587, 0.17677669
    %vm594 = vcmask 130048
    %v595 = vsel %vm594, %v590, -inf
    %596 = vmax.xlane.f32.xlu0 %v595
    %v597 = vpop.xlane.xlu0 %596
    %v598 = vsel %vm594, %v591, -inf
    %599 = vmax.xlane.f32.xlu0 %v598
    %v600 = vpop.xlane.xlu0 %599
    %v601 = vsel %vm594, %v592, -inf
    %602 = vmax.xlane.f32.xlu0 %v601
    %v603 = vpop.xlane.xlu0 %602
    %v604 = vsel %vm594, %v593, -inf
    %605 = vmax.xlane.f32.xlu0 %v604
    %v606 = vpop.xlane.xlu0 %605
    %v607 = vsub.f32 %v590, %v597
    %v608 = vsub.f32 %v591, %v600
    %v609 = vsub.f32 %v592, %v603
    %v610 = vsub.f32 %v593, %v606
    %v611 = vmul.f32 %v607, 1.442695
    %v612 = vpow.pop %v611
    %v613 = vmul.f32 %v608, 1.442695
    %v614 = vpow.pop %v613
    %v615 = vmul.f32 %v609, 1.442695
    %v616 = vpow.pop %v615
    %v617 = vmul.f32 %v610, 1.442695
    %v618 = vpow.pop %v617
    %v619 = vsel %vm594, %v612, 0.0
    %620 = vadd.xlane.f32.xlu0 %v619
    %v621 = vpop.xlane.xlu0 %620
    %v622 = vsel %vm594, %v614, 0.0
    %623 = vadd.xlane.f32.xlu0 %v622
    %v624 = vpop.xlane.xlu0 %623
    %v625 = vsel %vm594, %v616, 0.0
    %626 = vadd.xlane.f32.xlu0 %v625
    %v627 = vpop.xlane.xlu0 %626
    %v628 = vsel %vm594, %v618, 0.0
    %629 = vadd.xlane.f32.xlu0 %v628
    %v630 = vpop.xlane.xlu0 %629
    %v631 = vrcp.pop %v621
    %v632 = vrcp.pop %v624
    %v633 = vrcp.pop %v627
    %v634 = vrcp.pop %v630
    %v635 = vmul.f32 %v612, %v631
    %v636 = vmul.f32 %v614, %v632
    %v637 = vmul.f32 %v616, %v633
    %v638 = vmul.f32 %v618, %v634
    %v639 = vpack.c.bf16 %v636, %v635
    %v640 = vpack.c.bf16 %v638, %v637
    %v642 = vsel %vm594, %v639, 0
    %644 = vmatprep.subr.bf16.mxu0 0
    %645 = vmatpush1.bf16.msra.mxu0 0
    %646 = vmatprep.subr.bf16.mxu0 0
    %647 = vmatpush1.bf16.msra.mxu0 0
    %648 = vmatprep.subr.bf16.mxu0 0
    %649 = vmatpush1.bf16.msra.mxu0 0
    %650 = vmatprep.subr.bf16.mxu0 0
    %651 = vmatpush1.bf16.msra.mxu0 0
    %652 = vmatprep.subr.bf16.mxu0 0
    %653 = vmatpush1.bf16.msra.mxu0 0
    %654 = vmatprep.subr.bf16.mxu0 0
    %655 = vmatpush1.bf16.msra.mxu0 0
    %656 = vmatprep.subr.bf16.mxu0 0
    %657 = vmatpush1.bf16.msra.mxu0 0
    %658 = vmatprep.subr.bf16.mxu0 0
    %659 = vmatpush1.bf16.msra.mxu0 %v493
    %660 = vmatprep.subr.bf16.mxu0 0
    %661 = vmatpush2.bf16.msra.mxu0 0
    %662 = vmatprep.subr.bf16.mxu0 0
    %663 = vmatpush2.bf16.msra.mxu0 0
    %664 = vmatprep.subr.bf16.mxu0 0
    %665 = vmatpush2.bf16.msra.mxu0 0
    %666 = vmatprep.subr.bf16.mxu0 0
    %667 = vmatpush2.bf16.msra.mxu0 0
    %668 = vmatprep.subr.bf16.mxu0 0
    %669 = vmatpush2.bf16.msra.mxu0 0
    %670 = vmatprep.subr.bf16.mxu0 0
    %671 = vmatpush2.bf16.msra.mxu0 0
    %672 = vmatprep.subr.bf16.mxu0 0
    %673 = vmatpush2.bf16.msra.mxu0 0
    %674 = vmatprep.subr.bf16.mxu0 0
    %675 = vmatpush2.bf16.msra.mxu0 0
    %676 = vmatprep.mubr.bf16.mxu0 0
    %677 = vmatmul.mubr.bf16.gmra.mxu0 %v642
    %v678 = vpop.f32.mrf.mxu0
    %v679 = vadd.f32 0.0, %v678
    %v680 = vpop.f32.mrf.mxu0
    %v681 = vpop.f32.mrf.mxu0
    %v682 = vadd.f32 0.0, %v681
    %v683 = vpop.f32.mrf.mxu0
    %684 = vdwg.mxu0
    %v686 = vsel %vm594, %v640, 0
    %688 = vmatprep.subr.bf16.mxu0 0
    %689 = vmatpush1.bf16.msra.mxu0 0
    %690 = vmatprep.subr.bf16.mxu0 0
    %691 = vmatpush1.bf16.msra.mxu0 0
    %692 = vmatprep.subr.bf16.mxu0 0
    %693 = vmatpush1.bf16.msra.mxu0 0
    %694 = vmatprep.subr.bf16.mxu0 0
    %695 = vmatpush1.bf16.msra.mxu0 0
    %696 = vmatprep.subr.bf16.mxu0 0
    %697 = vmatpush1.bf16.msra.mxu0 0
    %698 = vmatprep.subr.bf16.mxu0 0
    %699 = vmatpush1.bf16.msra.mxu0 0
    %700 = vmatprep.subr.bf16.mxu0 0
    %701 = vmatpush1.bf16.msra.mxu0 0
    %702 = vmatprep.subr.bf16.mxu0 0
    %703 = vmatpush1.bf16.msra.mxu0 %v494
    %704 = vmatprep.subr.bf16.mxu0 0
    %705 = vmatpush2.bf16.msra.mxu0 0
    %706 = vmatprep.subr.bf16.mxu0 0
    %707 = vmatpush2.bf16.msra.mxu0 0
    %708 = vmatprep.subr.bf16.mxu0 0
    %709 = vmatpush2.bf16.msra.mxu0 0
    %710 = vmatprep.subr.bf16.mxu0 0
    %711 = vmatpush2.bf16.msra.mxu0 0
    %712 = vmatprep.subr.bf16.mxu0 0
    %713 = vmatpush2.bf16.msra.mxu0 0
    %714 = vmatprep.subr.bf16.mxu0 0
    %715 = vmatpush2.bf16.msra.mxu0 0
    %716 = vmatprep.subr.bf16.mxu0 0
    %717 = vmatpush2.bf16.msra.mxu0 0
    %718 = vmatprep.subr.bf16.mxu0 0
    %719 = vmatpush2.bf16.msra.mxu0 0
    %720 = vmatprep.mubr.bf16.mxu0 0
    %721 = vmatmul.mubr.bf16.gmra.mxu0 %v686
    %v722 = vpop.f32.mrf.mxu0
    %v723 = vadd.f32 0.0, %v722
    %v724 = vpop.f32.mrf.mxu0
    %v725 = vpop.f32.mrf.mxu0
    %v726 = vadd.f32 0.0, %v725
    %v727 = vpop.f32.mrf.mxu0
    %728 = vdwg.mxu0
    %730 = vrot.lane.b32.xlu0 %v489, 96
    %v731 = vpop.permute.xlu0 %730
    %733 = vrot.lane.b32.xlu0 %v491, 96
    %v734 = vpop.permute.xlu0 %733
    %v736 = vsel %vm495, %v731, 0
    %v739 = vsel %vm495, %v734, 0
    %741 = vmatprep.subr.bf16.mxu0 0
    %742 = vmatpush1.bf16.xpose.msra.mxu0 0
    %743 = vmatprep.subr.bf16.mxu0 0
    %744 = vmatpush1.bf16.xpose.msra.mxu0 0
    %745 = vmatprep.subr.bf16.mxu0 0
    %746 = vmatpush1.bf16.xpose.msra.mxu0 0
    %747 = vmatprep.subr.bf16.mxu0 0
    %748 = vmatpush1.bf16.xpose.msra.mxu0 0
    %749 = vmatprep.subr.bf16.mxu0 0
    %750 = vmatpush1.bf16.xpose.msra.mxu0 0
    %751 = vmatprep.subr.bf16.mxu0 0
    %752 = vmatpush1.bf16.xpose.msra.mxu0 0
    %753 = vmatprep.subr.bf16.mxu0 0
    %754 = vmatpush1.bf16.xpose.msra.mxu0 0
    %755 = vmatprep.subr.bf16.mxu0 0
    %756 = vmatpush1.bf16.xpose.msra.mxu0 %v739
    %757 = vmatprep.subr.bf16.mxu0 0
    %758 = vmatpush2.bf16.xpose.msra.mxu0 0
    %759 = vmatprep.subr.bf16.mxu0 0
    %760 = vmatpush2.bf16.xpose.msra.mxu0 0
    %761 = vmatprep.subr.bf16.mxu0 0
    %762 = vmatpush2.bf16.xpose.msra.mxu0 0
    %763 = vmatprep.subr.bf16.mxu0 0
    %764 = vmatpush2.bf16.xpose.msra.mxu0 0
    %765 = vmatprep.subr.bf16.mxu0 0
    %766 = vmatpush2.bf16.xpose.msra.mxu0 0
    %767 = vmatprep.subr.bf16.mxu0 0
    %768 = vmatpush2.bf16.xpose.msra.mxu0 0
    %769 = vmatprep.subr.bf16.mxu0 0
    %770 = vmatpush2.bf16.xpose.msra.mxu0 0
    %771 = vmatprep.subr.bf16.mxu0 0
    %772 = vmatpush2.bf16.xpose.msra.mxu0 0
    %773 = vmatprep.mubr.bf16.mxu0 0
    %774 = vmatmul.mubr.bf16.gmra.mxu0 %v736
    %v775 = vpop.f32.mrf.mxu0
    %v776 = vadd.f32 0.0, %v775
    %v777 = vpop.f32.mrf.mxu0
    %v778 = vpop.f32.mrf.mxu0
    %v779 = vadd.f32 0.0, %v778
    %v780 = vpop.f32.mrf.mxu0
    %781 = vdwg.mxu0
    %783 = vrot.lane.b32.xlu0 %v490, 96
    %v784 = vpop.permute.xlu0 %783
    %786 = vrot.lane.b32.xlu0 %v492, 96
    %v787 = vpop.permute.xlu0 %786
    %v789 = vsel %vm495, %v784, 0
    %v792 = vsel %vm495, %v787, 0
    %794 = vmatprep.subr.bf16.mxu0 0
    %795 = vmatpush1.bf16.xpose.msra.mxu0 0
    %796 = vmatprep.subr.bf16.mxu0 0
    %797 = vmatpush1.bf16.xpose.msra.mxu0 0
    %798 = vmatprep.subr.bf16.mxu0 0
    %799 = vmatpush1.bf16.xpose.msra.mxu0 0
    %800 = vmatprep.subr.bf16.mxu0 0
    %801 = vmatpush1.bf16.xpose.msra.mxu0 0
    %802 = vmatprep.subr.bf16.mxu0 0
    %803 = vmatpush1.bf16.xpose.msra.mxu0 0
    %804 = vmatprep.subr.bf16.mxu0 0
    %805 = vmatpush1.bf16.xpose.msra.mxu0 0
    %806 = vmatprep.subr.bf16.mxu0 0
    %807 = vmatpush1.bf16.xpose.msra.mxu0 0
    %808 = vmatprep.subr.bf16.mxu0 0
    %809 = vmatpush1.bf16.xpose.msra.mxu0 %v792
    %810 = vmatprep.subr.bf16.mxu0 0
    %811 = vmatpush2.bf16.xpose.msra.mxu0 0
    %812 = vmatprep.subr.bf16.mxu0 0
    %813 = vmatpush2.bf16.xpose.msra.mxu0 0
    %814 = vmatprep.subr.bf16.mxu0 0
    %815 = vmatpush2.bf16.xpose.msra.mxu0 0
    %816 = vmatprep.subr.bf16.mxu0 0
    %817 = vmatpush2.bf16.xpose.msra.mxu0 0
    %818 = vmatprep.subr.bf16.mxu0 0
    %819 = vmatpush2.bf16.xpose.msra.mxu0 0
    %820 = vmatprep.subr.bf16.mxu0 0
    %821 = vmatpush2.bf16.xpose.msra.mxu0 0
    %822 = vmatprep.subr.bf16.mxu0 0
    %823 = vmatpush2.bf16.xpose.msra.mxu0 0
    %824 = vmatprep.subr.bf16.mxu0 0
    %825 = vmatpush2.bf16.xpose.msra.mxu0 0
    %826 = vmatprep.mubr.bf16.mxu0 0
    %827 = vmatmul.mubr.bf16.gmra.mxu0 %v789
    %v828 = vpop.f32.mrf.mxu0
    %v829 = vadd.f32 0.0, %v828
    %v830 = vpop.f32.mrf.mxu0
    %v831 = vpop.f32.mrf.mxu0
    %v832 = vadd.f32 0.0, %v831
    %v833 = vpop.f32.mrf.mxu0
    %834 = vdwg.mxu0
    %v835 = vmul.f32 %v776, 0.17677669
    %v836 = vmul.f32 %v779, 0.17677669
    %v837 = vmul.f32 %v829, 0.17677669
    %v838 = vmul.f32 %v832, 0.17677669
    %v839 = vsel %vm594, %v835, -inf
    %840 = vmax.xlane.f32.xlu0 %v839
    %v841 = vpop.xlane.xlu0 %840
    %v842 = vsel %vm594, %v836, -inf
    %843 = vmax.xlane.f32.xlu0 %v842
    %v844 = vpop.xlane.xlu0 %843
    %v845 = vsel %vm594, %v837, -inf
    %846 = vmax.xlane.f32.xlu0 %v845
    %v847 = vpop.xlane.xlu0 %846
    %v848 = vsel %vm594, %v838, -inf
    %849 = vmax.xlane.f32.xlu0 %v848
    %v850 = vpop.xlane.xlu0 %849
    %v851 = vsub.f32 %v835, %v841
    %v852 = vsub.f32 %v836, %v844
    %v853 = vsub.f32 %v837, %v847
    %v854 = vsub.f32 %v838, %v850
    %v855 = vmul.f32 %v851, 1.442695
    %v856 = vpow.pop %v855
    %v857 = vmul.f32 %v852, 1.442695
    %v858 = vpow.pop %v857
    %v859 = vmul.f32 %v853, 1.442695
    %v860 = vpow.pop %v859
    %v861 = vmul.f32 %v854, 1.442695
    %v862 = vpow.pop %v861
    %v863 = vsel %vm594, %v856, 0.0
    %864 = vadd.xlane.f32.xlu0 %v863
    %v865 = vpop.xlane.xlu0 %864
    %v866 = vsel %vm594, %v858, 0.0
    %867 = vadd.xlane.f32.xlu0 %v866
    %v868 = vpop.xlane.xlu0 %867
    %v869 = vsel %vm594, %v860, 0.0
    %870 = vadd.xlane.f32.xlu0 %v869
    %v871 = vpop.xlane.xlu0 %870
    %v872 = vsel %vm594, %v862, 0.0
    %873 = vadd.xlane.f32.xlu0 %v872
    %v874 = vpop.xlane.xlu0 %873
    %v875 = vrcp.pop %v865
    %v876 = vrcp.pop %v868
    %v877 = vrcp.pop %v871
    %v878 = vrcp.pop %v874
    %v879 = vmul.f32 %v856, %v875
    %v880 = vmul.f32 %v858, %v876
    %v881 = vmul.f32 %v860, %v877
    %v882 = vmul.f32 %v862, %v878
    %v883 = vpack.c.bf16 %v880, %v879
    %v884 = vpack.c.bf16 %v882, %v881
    %886 = vrot.lane.b32.xlu0 %v493, 96
    %v887 = vpop.permute.xlu0 %886
    %v890 = vsel %vm594, %v883, 0
    %892 = vmatprep.subr.bf16.mxu0 0
    %893 = vmatpush1.bf16.msra.mxu0 0
    %894 = vmatprep.subr.bf16.mxu0 0
    %895 = vmatpush1.bf16.msra.mxu0 0
    %896 = vmatprep.subr.bf16.mxu0 0
    %897 = vmatpush1.bf16.msra.mxu0 0
    %898 = vmatprep.subr.bf16.mxu0 0
    %899 = vmatpush1.bf16.msra.mxu0 0
    %900 = vmatprep.subr.bf16.mxu0 0
    %901 = vmatpush1.bf16.msra.mxu0 0
    %902 = vmatprep.subr.bf16.mxu0 0
    %903 = vmatpush1.bf16.msra.mxu0 0
    %904 = vmatprep.subr.bf16.mxu0 0
    %905 = vmatpush1.bf16.msra.mxu0 0
    %906 = vmatprep.subr.bf16.mxu0 0
    %907 = vmatpush1.bf16.msra.mxu0 %v887
    %908 = vmatprep.subr.bf16.mxu0 0
    %909 = vmatpush2.bf16.msra.mxu0 0
    %910 = vmatprep.subr.bf16.mxu0 0
    %911 = vmatpush2.bf16.msra.mxu0 0
    %912 = vmatprep.subr.bf16.mxu0 0
    %913 = vmatpush2.bf16.msra.mxu0 0
    %914 = vmatprep.subr.bf16.mxu0 0
    %915 = vmatpush2.bf16.msra.mxu0 0
    %916 = vmatprep.subr.bf16.mxu0 0
    %917 = vmatpush2.bf16.msra.mxu0 0
    %918 = vmatprep.subr.bf16.mxu0 0
    %919 = vmatpush2.bf16.msra.mxu0 0
    %920 = vmatprep.subr.bf16.mxu0 0
    %921 = vmatpush2.bf16.msra.mxu0 0
    %922 = vmatprep.subr.bf16.mxu0 0
    %923 = vmatpush2.bf16.msra.mxu0 0
    %924 = vmatprep.mubr.bf16.mxu0 0
    %925 = vmatmul.mubr.bf16.gmra.mxu0 %v890
    %v926 = vpop.f32.mrf.mxu0
    %v927 = vadd.f32 0.0, %v926
    %v928 = vpop.f32.mrf.mxu0
    %v929 = vpop.f32.mrf.mxu0
    %v930 = vadd.f32 0.0, %v929
    %v931 = vpop.f32.mrf.mxu0
    %932 = vdwg.mxu0
    %934 = vrot.lane.b32.xlu0 %v494, 96
    %v935 = vpop.permute.xlu0 %934
    %v938 = vsel %vm594, %v884, 0
    %940 = vmatprep.subr.bf16.mxu0 0
    %941 = vmatpush1.bf16.msra.mxu0 0
    %942 = vmatprep.subr.bf16.mxu0 0
    %943 = vmatpush1.bf16.msra.mxu0 0
    %944 = vmatprep.subr.bf16.mxu0 0
    %945 = vmatpush1.bf16.msra.mxu0 0
    %946 = vmatprep.subr.bf16.mxu0 0
    %947 = vmatpush1.bf16.msra.mxu0 0
    %948 = vmatprep.subr.bf16.mxu0 0
    %949 = vmatpush1.bf16.msra.mxu0 0
    %950 = vmatprep.subr.bf16.mxu0 0
    %951 = vmatpush1.bf16.msra.mxu0 0
    %952 = vmatprep.subr.bf16.mxu0 0
    %953 = vmatpush1.bf16.msra.mxu0 0
    %954 = vmatprep.subr.bf16.mxu0 0
    %955 = vmatpush1.bf16.msra.mxu0 %v935
    %956 = vmatprep.subr.bf16.mxu0 0
    %957 = vmatpush2.bf16.msra.mxu0 0
    %958 = vmatprep.subr.bf16.mxu0 0
    %959 = vmatpush2.bf16.msra.mxu0 0
    %960 = vmatprep.subr.bf16.mxu0 0
    %961 = vmatpush2.bf16.msra.mxu0 0
    %962 = vmatprep.subr.bf16.mxu0 0
    %963 = vmatpush2.bf16.msra.mxu0 0
    %964 = vmatprep.subr.bf16.mxu0 0
    %965 = vmatpush2.bf16.msra.mxu0 0
    %966 = vmatprep.subr.bf16.mxu0 0
    %967 = vmatpush2.bf16.msra.mxu0 0
    %968 = vmatprep.subr.bf16.mxu0 0
    %969 = vmatpush2.bf16.msra.mxu0 0
    %970 = vmatprep.subr.bf16.mxu0 0
    %971 = vmatpush2.bf16.msra.mxu0 0
    %972 = vmatprep.mubr.bf16.mxu0 0
    %973 = vmatmul.mubr.bf16.gmra.mxu0 %v938
    %v974 = vpop.f32.mrf.mxu0
    %v975 = vadd.f32 0.0, %v974
    %v976 = vpop.f32.mrf.mxu0
    %v977 = vpop.f32.mrf.mxu0
    %v978 = vadd.f32 0.0, %v977
    %v979 = vpop.f32.mrf.mxu0
    %980 = vdwg.mxu0
    %981 = vrot.lane.b32.xlu0 %v489, 64
    %v982 = vpop.permute.xlu0 %981
    %983 = vrot.lane.b32.xlu0 %v491, 64
    %v984 = vpop.permute.xlu0 %983
    %v986 = vsel %vm495, %v982, 0
    %v989 = vsel %vm495, %v984, 0
    %991 = vmatprep.subr.bf16.mxu0 0
    %992 = vmatpush1.bf16.xpose.msra.mxu0 0
    %993 = vmatprep.subr.bf16.mxu0 0
    %994 = vmatpush1.bf16.xpose.msra.mxu0 0
    %995 = vmatprep.subr.bf16.mxu0 0
    %996 = vmatpush1.bf16.xpose.msra.mxu0 0
    %997 = vmatprep.subr.bf16.mxu0 0
    %998 = vmatpush1.bf16.xpose.msra.mxu0 0
    %999 = vmatprep.subr.bf16.mxu0 0
    %1000 = vmatpush1.bf16.xpose.msra.mxu0 0
    %1001 = vmatprep.subr.bf16.mxu0 0
    %1002 = vmatpush1.bf16.xpose.msra.mxu0 0
    %1003 = vmatprep.subr.bf16.mxu0 0
    %1004 = vmatpush1.bf16.xpose.msra.mxu0 0
    %1005 = vmatprep.subr.bf16.mxu0 0
    %1006 = vmatpush1.bf16.xpose.msra.mxu0 %v989
    %1007 = vmatprep.subr.bf16.mxu0 0
    %1008 = vmatpush2.bf16.xpose.msra.mxu0 0
    %1009 = vmatprep.subr.bf16.mxu0 0
    %1010 = vmatpush2.bf16.xpose.msra.mxu0 0
    %1011 = vmatprep.subr.bf16.mxu0 0
    %1012 = vmatpush2.bf16.xpose.msra.mxu0 0
    %1013 = vmatprep.subr.bf16.mxu0 0
    %1014 = vmatpush2.bf16.xpose.msra.mxu0 0
    %1015 = vmatprep.subr.bf16.mxu0 0
    %1016 = vmatpush2.bf16.xpose.msra.mxu0 0
    %1017 = vmatprep.subr.bf16.mxu0 0
    %1018 = vmatpush2.bf16.xpose.msra.mxu0 0
    %1019 = vmatprep.subr.bf16.mxu0 0
    %1020 = vmatpush2.bf16.xpose.msra.mxu0 0
    %1021 = vmatprep.subr.bf16.mxu0 0
    %1022 = vmatpush2.bf16.xpose.msra.mxu0 0
    %1023 = vmatprep.mubr.bf16.mxu0 0
    %1024 = vmatmul.mubr.bf16.gmra.mxu0 %v986
    %v1025 = vpop.f32.mrf.mxu0
    %v1026 = vadd.f32 0.0, %v1025
    %v1027 = vpop.f32.mrf.mxu0
    %v1028 = vpop.f32.mrf.mxu0
    %v1029 = vadd.f32 0.0, %v1028
    %v1030 = vpop.f32.mrf.mxu0
    %1031 = vdwg.mxu0
    %1032 = vrot.lane.b32.xlu0 %v490, 64
    %v1033 = vpop.permute.xlu0 %1032
    %1034 = vrot.lane.b32.xlu0 %v492, 64
    %v1035 = vpop.permute.xlu0 %1034
    %v1037 = vsel %vm495, %v1033, 0
    %v1040 = vsel %vm495, %v1035, 0
    %1042 = vmatprep.subr.bf16.mxu0 0
    %1043 = vmatpush1.bf16.xpose.msra.mxu0 0
    %1044 = vmatprep.subr.bf16.mxu0 0
    %1045 = vmatpush1.bf16.xpose.msra.mxu0 0
    %1046 = vmatprep.subr.bf16.mxu0 0
    %1047 = vmatpush1.bf16.xpose.msra.mxu0 0
    %1048 = vmatprep.subr.bf16.mxu0 0
    %1049 = vmatpush1.bf16.xpose.msra.mxu0 0
    %1050 = vmatprep.subr.bf16.mxu0 0
    %1051 = vmatpush1.bf16.xpose.msra.mxu0 0
    %1052 = vmatprep.subr.bf16.mxu0 0
    %1053 = vmatpush1.bf16.xpose.msra.mxu0 0
    %1054 = vmatprep.subr.bf16.mxu0 0
    %1055 = vmatpush1.bf16.xpose.msra.mxu0 0
    %1056 = vmatprep.subr.bf16.mxu0 0
    %1057 = vmatpush1.bf16.xpose.msra.mxu0 %v1040
    %1058 = vmatprep.subr.bf16.mxu0 0
    %1059 = vmatpush2.bf16.xpose.msra.mxu0 0
    %1060 = vmatprep.subr.bf16.mxu0 0
    %1061 = vmatpush2.bf16.xpose.msra.mxu0 0
    %1062 = vmatprep.subr.bf16.mxu0 0
    %1063 = vmatpush2.bf16.xpose.msra.mxu0 0
    %1064 = vmatprep.subr.bf16.mxu0 0
    %1065 = vmatpush2.bf16.xpose.msra.mxu0 0
    %1066 = vmatprep.subr.bf16.mxu0 0
    %1067 = vmatpush2.bf16.xpose.msra.mxu0 0
    %1068 = vmatprep.subr.bf16.mxu0 0
    %1069 = vmatpush2.bf16.xpose.msra.mxu0 0
    %1070 = vmatprep.subr.bf16.mxu0 0
    %1071 = vmatpush2.bf16.xpose.msra.mxu0 0
    %1072 = vmatprep.subr.bf16.mxu0 0
    %1073 = vmatpush2.bf16.xpose.msra.mxu0 0
    %1074 = vmatprep.mubr.bf16.mxu0 0
    %1075 = vmatmul.mubr.bf16.gmra.mxu0 %v1037
    %v1076 = vpop.f32.mrf.mxu0
    %v1077 = vadd.f32 0.0, %v1076
    %v1078 = vpop.f32.mrf.mxu0
    %v1079 = vpop.f32.mrf.mxu0
    %v1080 = vadd.f32 0.0, %v1079
    %v1081 = vpop.f32.mrf.mxu0
    %1082 = vdwg.mxu0
    %v1083 = vmul.f32 %v1026, 0.17677669
    %v1084 = vmul.f32 %v1029, 0.17677669
    %v1085 = vmul.f32 %v1077, 0.17677669
    %v1086 = vmul.f32 %v1080, 0.17677669
    %v1087 = vsel %vm594, %v1083, -inf
    %1088 = vmax.xlane.f32.xlu0 %v1087
    %v1089 = vpop.xlane.xlu0 %1088
    %v1090 = vsel %vm594, %v1084, -inf
    %1091 = vmax.xlane.f32.xlu0 %v1090
    %v1092 = vpop.xlane.xlu0 %1091
    %v1093 = vsel %vm594, %v1085, -inf
    %1094 = vmax.xlane.f32.xlu0 %v1093
    %v1095 = vpop.xlane.xlu0 %1094
    %v1096 = vsel %vm594, %v1086, -inf
    %1097 = vmax.xlane.f32.xlu0 %v1096
    %v1098 = vpop.xlane.xlu0 %1097
    %v1099 = vsub.f32 %v1083, %v1089
    %v1100 = vsub.f32 %v1084, %v1092
    %v1101 = vsub.f32 %v1085, %v1095
    %v1102 = vsub.f32 %v1086, %v1098
    %v1103 = vmul.f32 %v1099, 1.442695
    %v1104 = vpow.pop %v1103
    %v1105 = vmul.f32 %v1100, 1.442695
    %v1106 = vpow.pop %v1105
    %v1107 = vmul.f32 %v1101, 1.442695
    %v1108 = vpow.pop %v1107
    %v1109 = vmul.f32 %v1102, 1.442695
    %v1110 = vpow.pop %v1109
    %v1111 = vsel %vm594, %v1104, 0.0
    %1112 = vadd.xlane.f32.xlu0 %v1111
    %v1113 = vpop.xlane.xlu0 %1112
    %v1114 = vsel %vm594, %v1106, 0.0
    %1115 = vadd.xlane.f32.xlu0 %v1114
    %v1116 = vpop.xlane.xlu0 %1115
    %v1117 = vsel %vm594, %v1108, 0.0
    %1118 = vadd.xlane.f32.xlu0 %v1117
    %v1119 = vpop.xlane.xlu0 %1118
    %v1120 = vsel %vm594, %v1110, 0.0
    %1121 = vadd.xlane.f32.xlu0 %v1120
    %v1122 = vpop.xlane.xlu0 %1121
    %v1123 = vrcp.pop %v1113
    %v1124 = vrcp.pop %v1116
    %v1125 = vrcp.pop %v1119
    %v1126 = vrcp.pop %v1122
    %v1127 = vmul.f32 %v1104, %v1123
    %v1128 = vmul.f32 %v1106, %v1124
    %v1129 = vmul.f32 %v1108, %v1125
    %v1130 = vmul.f32 %v1110, %v1126
    %v1131 = vpack.c.bf16 %v1128, %v1127
    %v1132 = vpack.c.bf16 %v1130, %v1129
    %1133 = vrot.lane.b32.xlu0 %v493, 64
    %v1134 = vpop.permute.xlu0 %1133
    %v1137 = vsel %vm594, %v1131, 0
    %1139 = vmatprep.subr.bf16.mxu0 0
    %1140 = vmatpush1.bf16.msra.mxu0 0
    %1141 = vmatprep.subr.bf16.mxu0 0
    %1142 = vmatpush1.bf16.msra.mxu0 0
    %1143 = vmatprep.subr.bf16.mxu0 0
    %1144 = vmatpush1.bf16.msra.mxu0 0
    %1145 = vmatprep.subr.bf16.mxu0 0
    %1146 = vmatpush1.bf16.msra.mxu0 0
    %1147 = vmatprep.subr.bf16.mxu0 0
    %1148 = vmatpush1.bf16.msra.mxu0 0
    %1149 = vmatprep.subr.bf16.mxu0 0
    %1150 = vmatpush1.bf16.msra.mxu0 0
    %1151 = vmatprep.subr.bf16.mxu0 0
    %1152 = vmatpush1.bf16.msra.mxu0 0
    %1153 = vmatprep.subr.bf16.mxu0 0
    %1154 = vmatpush1.bf16.msra.mxu0 %v1134
    %1155 = vmatprep.subr.bf16.mxu0 0
    %1156 = vmatpush2.bf16.msra.mxu0 0
    %1157 = vmatprep.subr.bf16.mxu0 0
    %1158 = vmatpush2.bf16.msra.mxu0 0
    %1159 = vmatprep.subr.bf16.mxu0 0
    %1160 = vmatpush2.bf16.msra.mxu0 0
    %1161 = vmatprep.subr.bf16.mxu0 0
    %1162 = vmatpush2.bf16.msra.mxu0 0
    %1163 = vmatprep.subr.bf16.mxu0 0
    %1164 = vmatpush2.bf16.msra.mxu0 0
    %1165 = vmatprep.subr.bf16.mxu0 0
    %1166 = vmatpush2.bf16.msra.mxu0 0
    %1167 = vmatprep.subr.bf16.mxu0 0
    %1168 = vmatpush2.bf16.msra.mxu0 0
    %1169 = vmatprep.subr.bf16.mxu0 0
    %1170 = vmatpush2.bf16.msra.mxu0 0
    %1171 = vmatprep.mubr.bf16.mxu0 0
    %1172 = vmatmul.mubr.bf16.gmra.mxu0 %v1137
    %v1173 = vpop.f32.mrf.mxu0
    %v1174 = vadd.f32 0.0, %v1173
    %v1175 = vpop.f32.mrf.mxu0
    %v1176 = vpop.f32.mrf.mxu0
    %v1177 = vadd.f32 0.0, %v1176
    %v1178 = vpop.f32.mrf.mxu0
    %1179 = vdwg.mxu0
    %1180 = vrot.lane.b32.xlu0 %v494, 64
    %v1181 = vpop.permute.xlu0 %1180
    %v1184 = vsel %vm594, %v1132, 0
    %1186 = vmatprep.subr.bf16.mxu0 0
    %1187 = vmatpush1.bf16.msra.mxu0 0
    %1188 = vmatprep.subr.bf16.mxu0 0
    %1189 = vmatpush1.bf16.msra.mxu0 0
    %1190 = vmatprep.subr.bf16.mxu0 0
    %1191 = vmatpush1.bf16.msra.mxu0 0
    %1192 = vmatprep.subr.bf16.mxu0 0
    %1193 = vmatpush1.bf16.msra.mxu0 0
    %1194 = vmatprep.subr.bf16.mxu0 0
    %1195 = vmatpush1.bf16.msra.mxu0 0
    %1196 = vmatprep.subr.bf16.mxu0 0
    %1197 = vmatpush1.bf16.msra.mxu0 0
    %1198 = vmatprep.subr.bf16.mxu0 0
    %1199 = vmatpush1.bf16.msra.mxu0 0
    %1200 = vmatprep.subr.bf16.mxu0 0
    %1201 = vmatpush1.bf16.msra.mxu0 %v1181
    %1202 = vmatprep.subr.bf16.mxu0 0
    %1203 = vmatpush2.bf16.msra.mxu0 0
    %1204 = vmatprep.subr.bf16.mxu0 0
    %1205 = vmatpush2.bf16.msra.mxu0 0
    %1206 = vmatprep.subr.bf16.mxu0 0
    %1207 = vmatpush2.bf16.msra.mxu0 0
    %1208 = vmatprep.subr.bf16.mxu0 0
    %1209 = vmatpush2.bf16.msra.mxu0 0
    %1210 = vmatprep.subr.bf16.mxu0 0
    %1211 = vmatpush2.bf16.msra.mxu0 0
    %1212 = vmatprep.subr.bf16.mxu0 0
    %1213 = vmatpush2.bf16.msra.mxu0 0
    %1214 = vmatprep.subr.bf16.mxu0 0
    %1215 = vmatpush2.bf16.msra.mxu0 0
    %1216 = vmatprep.subr.bf16.mxu0 0
    %1217 = vmatpush2.bf16.msra.mxu0 0
    %1218 = vmatprep.mubr.bf16.mxu0 0
    %1219 = vmatmul.mubr.bf16.gmra.mxu0 %v1184
    %v1220 = vpop.f32.mrf.mxu0
    %v1221 = vadd.f32 0.0, %v1220
    %v1222 = vpop.f32.mrf.mxu0
    %v1223 = vpop.f32.mrf.mxu0
    %v1224 = vadd.f32 0.0, %v1223
    %v1225 = vpop.f32.mrf.mxu0
    %1226 = vdwg.mxu0
    %1227 = vrot.lane.b32.xlu0 %v489, 32
    %v1228 = vpop.permute.xlu0 %1227
    %1229 = vrot.lane.b32.xlu0 %v491, 32
    %v1230 = vpop.permute.xlu0 %1229
    %v1232 = vsel %vm495, %v1228, 0
    %v1235 = vsel %vm495, %v1230, 0
    %1237 = vmatprep.subr.bf16.mxu0 0
    %1238 = vmatpush1.bf16.xpose.msra.mxu0 0
    %1239 = vmatprep.subr.bf16.mxu0 0
    %1240 = vmatpush1.bf16.xpose.msra.mxu0 0
    %1241 = vmatprep.subr.bf16.mxu0 0
    %1242 = vmatpush1.bf16.xpose.msra.mxu0 0
    %1243 = vmatprep.subr.bf16.mxu0 0
    %1244 = vmatpush1.bf16.xpose.msra.mxu0 0
    %1245 = vmatprep.subr.bf16.mxu0 0
    %1246 = vmatpush1.bf16.xpose.msra.mxu0 0
    %1247 = vmatprep.subr.bf16.mxu0 0
    %1248 = vmatpush1.bf16.xpose.msra.mxu0 0
    %1249 = vmatprep.subr.bf16.mxu0 0
    %1250 = vmatpush1.bf16.xpose.msra.mxu0 0
    %1251 = vmatprep.subr.bf16.mxu0 0
    %1252 = vmatpush1.bf16.xpose.msra.mxu0 %v1235
    %1253 = vmatprep.subr.bf16.mxu0 0
    %1254 = vmatpush2.bf16.xpose.msra.mxu0 0
    %1255 = vmatprep.subr.bf16.mxu0 0
    %1256 = vmatpush2.bf16.xpose.msra.mxu0 0
    %1257 = vmatprep.subr.bf16.mxu0 0
    %1258 = vmatpush2.bf16.xpose.msra.mxu0 0
    %1259 = vmatprep.subr.bf16.mxu0 0
    %1260 = vmatpush2.bf16.xpose.msra.mxu0 0
    %1261 = vmatprep.subr.bf16.mxu0 0
    %1262 = vmatpush2.bf16.xpose.msra.mxu0 0
    %1263 = vmatprep.subr.bf16.mxu0 0
    %1264 = vmatpush2.bf16.xpose.msra.mxu0 0
    %1265 = vmatprep.subr.bf16.mxu0 0
    %1266 = vmatpush2.bf16.xpose.msra.mxu0 0
    %1267 = vmatprep.subr.bf16.mxu0 0
    %1268 = vmatpush2.bf16.xpose.msra.mxu0 0
    %1269 = vmatprep.mubr.bf16.mxu0 0
    %1270 = vmatmul.mubr.bf16.gmra.mxu0 %v1232
    %v1271 = vpop.f32.mrf.mxu0
    %v1272 = vadd.f32 0.0, %v1271
    %v1273 = vpop.f32.mrf.mxu0
    %v1274 = vpop.f32.mrf.mxu0
    %v1275 = vadd.f32 0.0, %v1274
    %v1276 = vpop.f32.mrf.mxu0
    %1277 = vdwg.mxu0
    %1278 = vrot.lane.b32.xlu0 %v490, 32
    %v1279 = vpop.permute.xlu0 %1278
    %1280 = vrot.lane.b32.xlu0 %v492, 32
    %v1281 = vpop.permute.xlu0 %1280
    %v1283 = vsel %vm495, %v1279, 0
    %v1286 = vsel %vm495, %v1281, 0
    %1288 = vmatprep.subr.bf16.mxu0 0
    %1289 = vmatpush1.bf16.xpose.msra.mxu0 0
    %1290 = vmatprep.subr.bf16.mxu0 0
    %1291 = vmatpush1.bf16.xpose.msra.mxu0 0
    %1292 = vmatprep.subr.bf16.mxu0 0
    %1293 = vmatpush1.bf16.xpose.msra.mxu0 0
    %1294 = vmatprep.subr.bf16.mxu0 0
    %1295 = vmatpush1.bf16.xpose.msra.mxu0 0
    %1296 = vmatprep.subr.bf16.mxu0 0
    %1297 = vmatpush1.bf16.xpose.msra.mxu0 0
    %1298 = vmatprep.subr.bf16.mxu0 0
    %1299 = vmatpush1.bf16.xpose.msra.mxu0 0
    %1300 = vmatprep.subr.bf16.mxu0 0
    %1301 = vmatpush1.bf16.xpose.msra.mxu0 0
    %1302 = vmatprep.subr.bf16.mxu0 0
    %1303 = vmatpush1.bf16.xpose.msra.mxu0 %v1286
    %1304 = vmatprep.subr.bf16.mxu0 0
    %1305 = vmatpush2.bf16.xpose.msra.mxu0 0
    %1306 = vmatprep.subr.bf16.mxu0 0
    %1307 = vmatpush2.bf16.xpose.msra.mxu0 0
    %1308 = vmatprep.subr.bf16.mxu0 0
    %1309 = vmatpush2.bf16.xpose.msra.mxu0 0
    %1310 = vmatprep.subr.bf16.mxu0 0
    %1311 = vmatpush2.bf16.xpose.msra.mxu0 0
    %1312 = vmatprep.subr.bf16.mxu0 0
    %1313 = vmatpush2.bf16.xpose.msra.mxu0 0
    %1314 = vmatprep.subr.bf16.mxu0 0
    %1315 = vmatpush2.bf16.xpose.msra.mxu0 0
    %1316 = vmatprep.subr.bf16.mxu0 0
    %1317 = vmatpush2.bf16.xpose.msra.mxu0 0
    %1318 = vmatprep.subr.bf16.mxu0 0
    %1319 = vmatpush2.bf16.xpose.msra.mxu0 0
    %1320 = vmatprep.mubr.bf16.mxu0 0
    %1321 = vmatmul.mubr.bf16.gmra.mxu0 %v1283
    %v1322 = vpop.f32.mrf.mxu0
    %v1323 = vadd.f32 0.0, %v1322
    %v1324 = vpop.f32.mrf.mxu0
    %v1325 = vpop.f32.mrf.mxu0
    %v1326 = vadd.f32 0.0, %v1325
    %v1327 = vpop.f32.mrf.mxu0
    %1328 = vdwg.mxu0
    %v1329 = vmul.f32 %v1272, 0.17677669
    %v1330 = vmul.f32 %v1275, 0.17677669
    %v1331 = vmul.f32 %v1323, 0.17677669
    %v1332 = vmul.f32 %v1326, 0.17677669
    %v1333 = vsel %vm594, %v1329, -inf
    %1334 = vmax.xlane.f32.xlu0 %v1333
    %v1335 = vpop.xlane.xlu0 %1334
    %v1336 = vsel %vm594, %v1330, -inf
    %1337 = vmax.xlane.f32.xlu0 %v1336
    %v1338 = vpop.xlane.xlu0 %1337
    %v1339 = vsel %vm594, %v1331, -inf
    %1340 = vmax.xlane.f32.xlu0 %v1339
    %v1341 = vpop.xlane.xlu0 %1340
    %v1342 = vsel %vm594, %v1332, -inf
    %1343 = vmax.xlane.f32.xlu0 %v1342
    %v1344 = vpop.xlane.xlu0 %1343
    %v1345 = vsub.f32 %v1329, %v1335
    %v1346 = vsub.f32 %v1330, %v1338
    %v1347 = vsub.f32 %v1331, %v1341
    %v1348 = vsub.f32 %v1332, %v1344
    %v1349 = vmul.f32 %v1345, 1.442695
    %v1350 = vpow.pop %v1349
    %v1351 = vmul.f32 %v1346, 1.442695
    %v1352 = vpow.pop %v1351
    %v1353 = vmul.f32 %v1347, 1.442695
    %v1354 = vpow.pop %v1353
    %v1355 = vmul.f32 %v1348, 1.442695
    %v1356 = vpow.pop %v1355
    %v1357 = vsel %vm594, %v1350, 0.0
    %1358 = vadd.xlane.f32.xlu0 %v1357
    %v1359 = vpop.xlane.xlu0 %1358
    %v1360 = vsel %vm594, %v1352, 0.0
    %1361 = vadd.xlane.f32.xlu0 %v1360
    %v1362 = vpop.xlane.xlu0 %1361
    %v1363 = vsel %vm594, %v1354, 0.0
    %1364 = vadd.xlane.f32.xlu0 %v1363
    %v1365 = vpop.xlane.xlu0 %1364
    %v1366 = vsel %vm594, %v1356, 0.0
    %1367 = vadd.xlane.f32.xlu0 %v1366
    %v1368 = vpop.xlane.xlu0 %1367
    %v1369 = vrcp.pop %v1359
    %v1370 = vrcp.pop %v1362
    %v1371 = vrcp.pop %v1365
    %v1372 = vrcp.pop %v1368
    %v1373 = vmul.f32 %v1350, %v1369
    %v1374 = vmul.f32 %v1352, %v1370
    %v1375 = vmul.f32 %v1354, %v1371
    %v1376 = vmul.f32 %v1356, %v1372
    %v1377 = vpack.c.bf16 %v1374, %v1373
    %v1378 = vpack.c.bf16 %v1376, %v1375
    %1379 = vrot.lane.b32.xlu0 %v493, 32
    %v1380 = vpop.permute.xlu0 %1379
    %v1383 = vsel %vm594, %v1377, 0
    %1385 = vmatprep.subr.bf16.mxu0 0
    %1386 = vmatpush1.bf16.msra.mxu0 0
    %1387 = vmatprep.subr.bf16.mxu0 0
    %1388 = vmatpush1.bf16.msra.mxu0 0
    %1389 = vmatprep.subr.bf16.mxu0 0
    %1390 = vmatpush1.bf16.msra.mxu0 0
    %1391 = vmatprep.subr.bf16.mxu0 0
    %1392 = vmatpush1.bf16.msra.mxu0 0
    %1393 = vmatprep.subr.bf16.mxu0 0
    %1394 = vmatpush1.bf16.msra.mxu0 0
    %1395 = vmatprep.subr.bf16.mxu0 0
    %1396 = vmatpush1.bf16.msra.mxu0 0
    %1397 = vmatprep.subr.bf16.mxu0 0
    %1398 = vmatpush1.bf16.msra.mxu0 0
    %1399 = vmatprep.subr.bf16.mxu0 0
    %1400 = vmatpush1.bf16.msra.mxu0 %v1380
    %1401 = vmatprep.subr.bf16.mxu0 0
    %1402 = vmatpush2.bf16.msra.mxu0 0
    %1403 = vmatprep.subr.bf16.mxu0 0
    %1404 = vmatpush2.bf16.msra.mxu0 0
    %1405 = vmatprep.subr.bf16.mxu0 0
    %1406 = vmatpush2.bf16.msra.mxu0 0
    %1407 = vmatprep.subr.bf16.mxu0 0
    %1408 = vmatpush2.bf16.msra.mxu0 0
    %1409 = vmatprep.subr.bf16.mxu0 0
    %1410 = vmatpush2.bf16.msra.mxu0 0
    %1411 = vmatprep.subr.bf16.mxu0 0
    %1412 = vmatpush2.bf16.msra.mxu0 0
    %1413 = vmatprep.subr.bf16.mxu0 0
    %1414 = vmatpush2.bf16.msra.mxu0 0
    %1415 = vmatprep.subr.bf16.mxu0 0
    %1416 = vmatpush2.bf16.msra.mxu0 0
    %1417 = vmatprep.mubr.bf16.mxu0 0
    %1418 = vmatmul.mubr.bf16.gmra.mxu0 %v1383
    %v1419 = vpop.f32.mrf.mxu0
    %v1420 = vadd.f32 0.0, %v1419
    %v1421 = vpop.f32.mrf.mxu0
    %v1422 = vpop.f32.mrf.mxu0
    %v1423 = vadd.f32 0.0, %v1422
    %v1424 = vpop.f32.mrf.mxu0
    %1425 = vdwg.mxu0
    %1426 = vrot.lane.b32.xlu0 %v494, 32
    %v1427 = vpop.permute.xlu0 %1426
    %v1430 = vsel %vm594, %v1378, 0
    %1432 = vmatprep.subr.bf16.mxu0 0
    %1433 = vmatpush1.bf16.msra.mxu0 0
    %1434 = vmatprep.subr.bf16.mxu0 0
    %1435 = vmatpush1.bf16.msra.mxu0 0
    %1436 = vmatprep.subr.bf16.mxu0 0
    %1437 = vmatpush1.bf16.msra.mxu0 0
    %1438 = vmatprep.subr.bf16.mxu0 0
    %1439 = vmatpush1.bf16.msra.mxu0 0
    %1440 = vmatprep.subr.bf16.mxu0 0
    %1441 = vmatpush1.bf16.msra.mxu0 0
    %1442 = vmatprep.subr.bf16.mxu0 0
    %1443 = vmatpush1.bf16.msra.mxu0 0
    %1444 = vmatprep.subr.bf16.mxu0 0
    %1445 = vmatpush1.bf16.msra.mxu0 0
    %1446 = vmatprep.subr.bf16.mxu0 0
    %1447 = vmatpush1.bf16.msra.mxu0 %v1427
    %1448 = vmatprep.subr.bf16.mxu0 0
    %1449 = vmatpush2.bf16.msra.mxu0 0
    %1450 = vmatprep.subr.bf16.mxu0 0
    %1451 = vmatpush2.bf16.msra.mxu0 0
    %1452 = vmatprep.subr.bf16.mxu0 0
    %1453 = vmatpush2.bf16.msra.mxu0 0
    %1454 = vmatprep.subr.bf16.mxu0 0
    %1455 = vmatpush2.bf16.msra.mxu0 0
    %1456 = vmatprep.subr.bf16.mxu0 0
    %1457 = vmatpush2.bf16.msra.mxu0 0
    %1458 = vmatprep.subr.bf16.mxu0 0
    %1459 = vmatpush2.bf16.msra.mxu0 0
    %1460 = vmatprep.subr.bf16.mxu0 0
    %1461 = vmatpush2.bf16.msra.mxu0 0
    %1462 = vmatprep.subr.bf16.mxu0 0
    %1463 = vmatpush2.bf16.msra.mxu0 0
    %1464 = vmatprep.mubr.bf16.mxu0 0
    %1465 = vmatmul.mubr.bf16.gmra.mxu0 %v1430
    %v1466 = vpop.f32.mrf.mxu0
    %v1467 = vadd.f32 0.0, %v1466
    %v1468 = vpop.f32.mrf.mxu0
    %v1469 = vpop.f32.mrf.mxu0
    %v1470 = vadd.f32 0.0, %v1469
    %v1471 = vpop.f32.mrf.mxu0
    %1472 = vdwg.mxu0
    %1477 = vrot.lane.b32.xlu0 %v927, 32
    %v1478 = vpop.permute.xlu0 %1477
    %1479 = vrot.lane.b32.xlu0 %v930, 32
    %v1480 = vpop.permute.xlu0 %1479
    %1481 = vrot.lane.b32.xlu0 %v975, 32
    %v1482 = vpop.permute.xlu0 %1481
    %1483 = vrot.lane.b32.xlu0 %v978, 32
    %v1484 = vpop.permute.xlu0 %1483
    %1493 = vrot.lane.b32.xlu0 %v1174, 64
    %v1494 = vpop.permute.xlu0 %1493
    %1495 = vrot.lane.b32.xlu0 %v1177, 64
    %v1496 = vpop.permute.xlu0 %1495
    %1497 = vrot.lane.b32.xlu0 %v1221, 64
    %v1498 = vpop.permute.xlu0 %1497
    %1499 = vrot.lane.b32.xlu0 %v1224, 64
    %v1500 = vpop.permute.xlu0 %1499
    %1509 = vrot.lane.b32.xlu0 %v1420, 96
    %v1510 = vpop.permute.xlu0 %1509
    %1511 = vrot.lane.b32.xlu0 %v1423, 96
    %v1512 = vpop.permute.xlu0 %1511
    %1513 = vrot.lane.b32.xlu0 %v1467, 96
    %v1514 = vpop.permute.xlu0 %1513
    %1515 = vrot.lane.b32.xlu0 %v1470, 96
    %v1516 = vpop.permute.xlu0 %1515
    %v1521 = vsel %vm495, %v679, %v1478
    %v1522 = vsel %vm495, %v682, %v1480
    %v1523 = vsel %vm495, %v723, %v1482
    %v1524 = vsel %vm495, %v726, %v1484
    %vm1525 = vcmask 523264
    %v1526 = vsel %vm1525, %v1521, %v1494
    %v1527 = vsel %vm1525, %v1522, %v1496
    %v1528 = vsel %vm1525, %v1523, %v1498
    %v1529 = vsel %vm1525, %v1524, %v1500
    %vm1530 = vcmask 785408
    %v1531 = vsel %vm1530, %v1526, %v1510
    %v1532 = vsel %vm1530, %v1527, %v1512
    %v1533 = vsel %vm1530, %v1528, %v1514
    %v1534 = vsel %vm1530, %v1529, %v1516
    %v1535 = vpack.c.bf16 %v1532, %v1531
    %v1536 = vpack.c.bf16 %v1534, %v1533
    %v1537 = vld [vmem:[#allocation10] sm:$0xf]
    %v1538 = vld [vmem:[#allocation10 + $0x4] sm:$0xf]
    %v1539 = vld [vmem:[#allocation10 + $0x8] sm:$0xf]
    %v1540 = vld [vmem:[#allocation10 + $0xc] sm:$0xf]
    %v1541 = vld [vmem:[#allocation10 + $0x10] sm:$0xf]
    %v1542 = vld [vmem:[#allocation10 + $0x14] sm:$0xf]
    %v1543 = vld [vmem:[#allocation10 + $0x18] sm:$0xf]
    %v1544 = vld [vmem:[#allocation10 + $0x1c] sm:$0xf]
    %v1545 = vld [vmem:[#allocation10 + $0x20] sm:$0xf]
    %v1546 = vld [vmem:[#allocation10 + $0x24] sm:$0xf]
    %v1547 = vld [vmem:[#allocation10 + $0x28] sm:$0xf]
    %v1548 = vld [vmem:[#allocation10 + $0x2c] sm:$0xf]
    %v1549 = vld [vmem:[#allocation10 + $0x30] sm:$0xf]
    %v1550 = vld [vmem:[#allocation10 + $0x34] sm:$0xf]
    %v1551 = vld [vmem:[#allocation10 + $0x38] sm:$0xf]
    %v1552 = vld [vmem:[#allocation10 + $0x3c] sm:$0xf]
    %v1553 = vld [vmem:[%s6] sm:$0x1]
    %v1555 = vlaneseq
    %v1556 = vshrl.u32 %v1555, 7
    %v1557 = vsub.s32 0, %v1556
    %v1558 = vrot.slane %v1553, %v1557
    %v1576 = vunpack.c.l.b16 %v1537
    %v1577 = vunpack.c.l.b16 %v1538
    %v1578 = vunpack.c.l.b16 %v1539
    %v1579 = vunpack.c.l.b16 %v1540
    %v1580 = vunpack.c.l.b16 %v1541
    %v1581 = vunpack.c.l.b16 %v1542
    %v1582 = vunpack.c.l.b16 %v1543
    %v1583 = vunpack.c.l.b16 %v1544
    %v1584 = vunpack.c.l.b16 %v1545
    %v1585 = vunpack.c.l.b16 %v1546
    %v1586 = vunpack.c.l.b16 %v1547
    %v1587 = vunpack.c.l.b16 %v1548
    %v1588 = vunpack.c.l.b16 %v1549
    %v1589 = vunpack.c.l.b16 %v1550
    %v1590 = vunpack.c.l.b16 %v1551
    %v1591 = vunpack.c.l.b16 %v1552
    %v1592 = vpack.c.b16 %v1577, %v1576
    %v1593 = vpack.c.b16 %v1579, %v1578
    %v1594 = vpack.c.b16 %v1581, %v1580
    %v1595 = vpack.c.b16 %v1583, %v1582
    %v1596 = vpack.c.b16 %v1585, %v1584
    %v1597 = vpack.c.b16 %v1587, %v1586
    %v1598 = vpack.c.b16 %v1589, %v1588
    %v1599 = vpack.c.b16 %v1591, %v1590
    %1608 = vmatprep.subr.bf16.mxu0 0
    %1609 = vmatpush1.bf16.msra.mxu0 %v1599
    %1610 = vmatprep.subr.bf16.mxu0 0
    %1611 = vmatpush1.bf16.msra.mxu0 %v1598
    %1612 = vmatprep.subr.bf16.mxu0 0
    %1613 = vmatpush1.bf16.msra.mxu0 %v1597
    %1614 = vmatprep.subr.bf16.mxu0 0
    %1615 = vmatpush1.bf16.msra.mxu0 %v1596
    %1616 = vmatprep.subr.bf16.mxu0 0
    %1617 = vmatpush1.bf16.msra.mxu0 %v1595
    %1618 = vmatprep.subr.bf16.mxu0 0
    %1619 = vmatpush1.bf16.msra.mxu0 %v1594
    %1620 = vmatprep.subr.bf16.mxu0 0
    %1621 = vmatpush1.bf16.msra.mxu0 %v1593
    %1622 = vmatprep.subr.bf16.mxu0 0
    %1623 = vmatpush1.bf16.msra.mxu0 %v1592
    %1624 = vmatprep.subr.bf16.mxu0 0
    %1625 = vmatpush2.bf16.msra.mxu0 0
    %1626 = vmatprep.subr.bf16.mxu0 0
    %1627 = vmatpush2.bf16.msra.mxu0 0
    %1628 = vmatprep.subr.bf16.mxu0 0
    %1629 = vmatpush2.bf16.msra.mxu0 0
    %1630 = vmatprep.subr.bf16.mxu0 0
    %1631 = vmatpush2.bf16.msra.mxu0 0
    %1632 = vmatprep.subr.bf16.mxu0 0
    %1633 = vmatpush2.bf16.msra.mxu0 0
    %1634 = vmatprep.subr.bf16.mxu0 0
    %1635 = vmatpush2.bf16.msra.mxu0 0
    %1636 = vmatprep.subr.bf16.mxu0 0
    %1637 = vmatpush2.bf16.msra.mxu0 0
    %1638 = vmatprep.subr.bf16.mxu0 0
    %1639 = vmatpush2.bf16.msra.mxu0 0
    %1640 = vmatprep.mubr.bf16.mxu0 0
    %1641 = vmatmul.mubr.bf16.gmra.mxu0 %v1535
    %v1642 = vpop.f32.mrf.mxu0
    %v1643 = vadd.f32 %v1558, %v1642
    %v1644 = vpop.f32.mrf.mxu0
    %v1645 = vpop.f32.mrf.mxu0
    %v1646 = vadd.f32 %v1558, %v1645
    %v1647 = vpop.f32.mrf.mxu0
    %1648 = vmatprep.mubr.bf16.mxu0 0
    %1649 = vmatmul.mubr.bf16.gmra.mxu0 %v1536
    %v1650 = vpop.f32.mrf.mxu0
    %v1651 = vadd.f32 %v1558, %v1650
    %v1652 = vpop.f32.mrf.mxu0
    %v1653 = vpop.f32.mrf.mxu0
    %v1654 = vadd.f32 %v1558, %v1653
    %v1655 = vpop.f32.mrf.mxu0
    %1656 = vdwg.mxu0
    %v1657 = vadd.f32 %v137, %v1643
    %v1658 = vadd.f32 %v138, %v1646
    %v1659 = vadd.f32 %v139, %v1651
    %v1660 = vadd.f32 %v140, %v1654
    %v1661 = vld [vmem:[%s7] sm:$0x1]
    %v1662 = vld [vmem:[%s8] sm:$0x1]
    %1663 = vadd.xlane.f32.xlu0 %v1657
    %v1664 = vpop.xlane.xlu0 %1663
    %1665 = vadd.xlane.f32.xlu0 %v1658
    %v1666 = vpop.xlane.xlu0 %1665
    %1667 = vadd.xlane.f32.xlu0 %v1659
    %v1668 = vpop.xlane.xlu0 %1667
    %1669 = vadd.xlane.f32.xlu0 %v1660
    %v1670 = vpop.xlane.xlu0 %1669
    %v1671 = vmul.f32 %v1664, %v151
    %v1672 = vmul.f32 %v1666, %v151
    %v1673 = vmul.f32 %v1668, %v151
    %v1674 = vmul.f32 %v1670, %v151
    %v1675 = vsub.f32 %v1657, %v1671
    %v1676 = vsub.f32 %v1658, %v1672
    %v1677 = vsub.f32 %v1659, %v1673
    %v1678 = vsub.f32 %v1660, %v1674
    %v1679 = vmul.f32 %v1675, %v1675
    %v1680 = vmul.f32 %v1676, %v1676
    %v1681 = vmul.f32 %v1677, %v1677
    %v1682 = vmul.f32 %v1678, %v1678
    %1683 = vadd.xlane.f32.xlu0 %v1679
    %v1684 = vpop.xlane.xlu0 %1683
    %1685 = vadd.xlane.f32.xlu0 %v1680
    %v1686 = vpop.xlane.xlu0 %1685
    %1687 = vadd.xlane.f32.xlu0 %v1681
    %v1688 = vpop.xlane.xlu0 %1687
    %1689 = vadd.xlane.f32.xlu0 %v1682
    %v1690 = vpop.xlane.xlu0 %1689
    %v1691 = vmul.f32 %v1684, %v151
    %v1692 = vmul.f32 %v1686, %v151
    %v1693 = vmul.f32 %v1688, %v151
    %v1694 = vmul.f32 %v1690, %v151
    %v1695 = vadd.f32 %v1691, 1e-05
    %v1696 = vadd.f32 %v1692, 1e-05
    %v1697 = vadd.f32 %v1693, 1e-05
    %v1698 = vadd.f32 %v1694, 1e-05
    %v1699 = vrsqrt.pop %v1695
    %v1700 = vrsqrt.pop %v1696
    %v1701 = vrsqrt.pop %v1697
    %v1702 = vrsqrt.pop %v1698
    %v1703 = vmul.f32 %v1675, %v1699
    %v1704 = vmul.f32 %v1676, %v1700
    %v1705 = vmul.f32 %v1677, %v1701
    %v1706 = vmul.f32 %v1678, %v1702
    %v1708 = vlaneseq
    %v1709 = vshrl.u32 %v1708, 7
    %v1710 = vsub.s32 0, %v1709
    %v1711 = vrot.slane %v1661, %v1710
    %v1713 = vmul.f32 %v1703, %v1711
    %v1714 = vmul.f32 %v1704, %v1711
    %v1715 = vmul.f32 %v1705, %v1711
    %v1716 = vmul.f32 %v1706, %v1711
    %v1718 = vlaneseq
    %v1719 = vshrl.u32 %v1718, 7
    %v1720 = vsub.s32 0, %v1719
    %v1721 = vrot.slane %v1662, %v1720
    %v1723 = vadd.f32 %v1713, %v1721
    %v1724 = vadd.f32 %v1714, %v1721
    %v1725 = vadd.f32 %v1715, %v1721
    %v1726 = vadd.f32 %v1716, %v1721
    %v1727 = vpack.c.bf16 %v1724, %v1723
    %v1728 = vpack.c.bf16 %v1726, %v1725
    %v1729 = vld [vmem:[#allocation11] sm:$0xff]
    %v1730 = vld [vmem:[#allocation11 + $0x8] sm:$0xff]
    %v1731 = vld [vmem:[#allocation11 + $0x10] sm:$0xff]
    %v1732 = vld [vmem:[#allocation11 + $0x18] sm:$0xff]
    %v1733 = vld [vmem:[#allocation11 + $0x20] sm:$0xff]
    %v1734 = vld [vmem:[#allocation11 + $0x28] sm:$0xff]
    %v1735 = vld [vmem:[#allocation11 + $0x30] sm:$0xff]
    %v1736 = vld [vmem:[#allocation11 + $0x38] sm:$0xff]
    %v1737 = vld [vmem:[#allocation11 + $0x40] sm:$0xff]
    %v1738 = vld [vmem:[#allocation11 + $0x48] sm:$0xff]
    %v1739 = vld [vmem:[#allocation11 + $0x50] sm:$0xff]
    %v1740 = vld [vmem:[#allocation11 + $0x58] sm:$0xff]
    %v1741 = vld [vmem:[#allocation11 + $0x60] sm:$0xff]
    %v1742 = vld [vmem:[#allocation11 + $0x68] sm:$0xff]
    %v1743 = vld [vmem:[#allocation11 + $0x70] sm:$0xff]
    %v1744 = vld [vmem:[#allocation11 + $0x78] sm:$0xff]
    %v1745 = vld [vmem:[#allocation11 + $0x80] sm:$0xff]
    %v1746 = vld [vmem:[#allocation11 + $0x88] sm:$0xff]
    %v1747 = vld [vmem:[#allocation11 + $0x90] sm:$0xff]
    %v1748 = vld [vmem:[#allocation11 + $0x98] sm:$0xff]
    %v1749 = vld [vmem:[#allocation11 + $0xa0] sm:$0xff]
    %v1750 = vld [vmem:[#allocation11 + $0xa8] sm:$0xff]
    %v1751 = vld [vmem:[#allocation11 + $0xb0] sm:$0xff]
    %v1752 = vld [vmem:[#allocation11 + $0xb8] sm:$0xff]
    %v1753 = vld [vmem:[#allocation11 + $0xc0] sm:$0xff]
    %v1754 = vld [vmem:[#allocation11 + $0xc8] sm:$0xff]
    %v1755 = vld [vmem:[#allocation11 + $0xd0] sm:$0xff]
    %v1756 = vld [vmem:[#allocation11 + $0xd8] sm:$0xff]
    %v1757 = vld [vmem:[#allocation11 + $0xe0] sm:$0xff]
    %v1758 = vld [vmem:[#allocation11 + $0xe8] sm:$0xff]
    %v1759 = vld [vmem:[#allocation11 + $0xf0] sm:$0xff]
    %v1760 = vld [vmem:[#allocation11 + $0xf8] sm:$0xff]
    %v1761 = vld [vmem:[%s10] sm:$0xf]
    %v1763 = vlaneseq
    %v1764 = vshrl.u32 %v1763, 7
    %v1765 = vsub.s32 0, %v1764
    %v1766 = vrot.slane %v1761, %v1765
    %v1767 = vlaneseq
    %v1768 = vshrl.u32 %v1767, 7
    %v1769 = vsub.s32 1, %v1768
    %v1770 = vrot.slane %v1761, %v1769
    %v1771 = vlaneseq
    %v1772 = vshrl.u32 %v1771, 7
    %v1773 = vsub.s32 2, %v1772
    %v1774 = vrot.slane %v1761, %v1773
    %v1775 = vlaneseq
    %v1776 = vshrl.u32 %v1775, 7
    %v1777 = vsub.s32 3, %v1776
    %v1778 = vrot.slane %v1761, %v1777
    %v1815 = vunpack.c.l.b16 %v1729
    %v1816 = vunpack.c.h.b16 %v1729
    %v1817 = vunpack.c.l.b16 %v1730
    %v1818 = vunpack.c.h.b16 %v1730
    %v1819 = vunpack.c.l.b16 %v1731
    %v1820 = vunpack.c.h.b16 %v1731
    %v1821 = vunpack.c.l.b16 %v1732
    %v1822 = vunpack.c.h.b16 %v1732
    %v1823 = vunpack.c.l.b16 %v1733
    %v1824 = vunpack.c.h.b16 %v1733
    %v1825 = vunpack.c.l.b16 %v1734
    %v1826 = vunpack.c.h.b16 %v1734
    %v1827 = vunpack.c.l.b16 %v1735
    %v1828 = vunpack.c.h.b16 %v1735
    %v1829 = vunpack.c.l.b16 %v1736
    %v1830 = vunpack.c.h.b16 %v1736
    %v1831 = vunpack.c.l.b16 %v1737
    %v1832 = vunpack.c.h.b16 %v1737
    %v1833 = vunpack.c.l.b16 %v1738
    %v1834 = vunpack.c.h.b16 %v1738
    %v1835 = vunpack.c.l.b16 %v1739
    %v1836 = vunpack.c.h.b16 %v1739
    %v1837 = vunpack.c.l.b16 %v1740
    %v1838 = vunpack.c.h.b16 %v1740
    %v1839 = vunpack.c.l.b16 %v1741
    %v1840 = vunpack.c.h.b16 %v1741
    %v1841 = vunpack.c.l.b16 %v1742
    %v1842 = vunpack.c.h.b16 %v1742
    %v1843 = vunpack.c.l.b16 %v1743
    %v1844 = vunpack.c.h.b16 %v1743
    %v1845 = vunpack.c.l.b16 %v1744
    %v1846 = vunpack.c.h.b16 %v1744
    %v1847 = vunpack.c.l.b16 %v1745
    %v1848 = vunpack.c.h.b16 %v1745
    %v1849 = vunpack.c.l.b16 %v1746
    %v1850 = vunpack.c.h.b16 %v1746
    %v1851 = vunpack.c.l.b16 %v1747
    %v1852 = vunpack.c.h.b16 %v1747
    %v1853 = vunpack.c.l.b16 %v1748
    %v1854 = vunpack.c.h.b16 %v1748
    %v1855 = vunpack.c.l.b16 %v1749
    %v1856 = vunpack.c.h.b16 %v1749
    %v1857 = vunpack.c.l.b16 %v1750
    %v1858 = vunpack.c.h.b16 %v1750
    %v1859 = vunpack.c.l.b16 %v1751
    %v1860 = vunpack.c.h.b16 %v1751
    %v1861 = vunpack.c.l.b16 %v1752
    %v1862 = vunpack.c.h.b16 %v1752
    %v1863 = vunpack.c.l.b16 %v1753
    %v1864 = vunpack.c.h.b16 %v1753
    %v1865 = vunpack.c.l.b16 %v1754
    %v1866 = vunpack.c.h.b16 %v1754
    %v1867 = vunpack.c.l.b16 %v1755
    %v1868 = vunpack.c.h.b16 %v1755
    %v1869 = vunpack.c.l.b16 %v1756
    %v1870 = vunpack.c.h.b16 %v1756
    %v1871 = vunpack.c.l.b16 %v1757
    %v1872 = vunpack.c.h.b16 %v1757
    %v1873 = vunpack.c.l.b16 %v1758
    %v1874 = vunpack.c.h.b16 %v1758
    %v1875 = vunpack.c.l.b16 %v1759
    %v1876 = vunpack.c.h.b16 %v1759
    %v1877 = vunpack.c.l.b16 %v1760
    %v1878 = vunpack.c.h.b16 %v1760
    %v1879 = vpack.c.b16 %v1819, %v1815
    %v1880 = vpack.c.b16 %v1820, %v1816
    %v1881 = vpack.c.b16 %v1821, %v1817
    %v1882 = vpack.c.b16 %v1822, %v1818
    %v1883 = vpack.c.b16 %v1827, %v1823
    %v1884 = vpack.c.b16 %v1828, %v1824
    %v1885 = vpack.c.b16 %v1829, %v1825
    %v1886 = vpack.c.b16 %v1830, %v1826
    %v1887 = vpack.c.b16 %v1835, %v1831
    %v1888 = vpack.c.b16 %v1836, %v1832
    %v1889 = vpack.c.b16 %v1837, %v1833
    %v1890 = vpack.c.b16 %v1838, %v1834
    %v1891 = vpack.c.b16 %v1843, %v1839
    %v1892 = vpack.c.b16 %v1844, %v1840
    %v1893 = vpack.c.b16 %v1845, %v1841
    %v1894 = vpack.c.b16 %v1846, %v1842
    %v1895 = vpack.c.b16 %v1851, %v1847
    %v1896 = vpack.c.b16 %v1852, %v1848
    %v1897 = vpack.c.b16 %v1853, %v1849
    %v1898 = vpack.c.b16 %v1854, %v1850
    %v1899 = vpack.c.b16 %v1859, %v1855
    %v1900 = vpack.c.b16 %v1860, %v1856
    %v1901 = vpack.c.b16 %v1861, %v1857
    %v1902 = vpack.c.b16 %v1862, %v1858
    %v1903 = vpack.c.b16 %v1867, %v1863
    %v1904 = vpack.c.b16 %v1868, %v1864
    %v1905 = vpack.c.b16 %v1869, %v1865
    %v1906 = vpack.c.b16 %v1870, %v1866
    %v1907 = vpack.c.b16 %v1875, %v1871
    %v1908 = vpack.c.b16 %v1876, %v1872
    %v1909 = vpack.c.b16 %v1877, %v1873
    %v1910 = vpack.c.b16 %v1878, %v1874
    %1943 = vmatprep.subr.bf16.mxu0 %v1908
    %1944 = vmatpush1.bf16.msra.mxu0 %v1907
    %1945 = vmatprep.subr.bf16.mxu0 %v1904
    %1946 = vmatpush1.bf16.msra.mxu0 %v1903
    %1947 = vmatprep.subr.bf16.mxu0 %v1900
    %1948 = vmatpush1.bf16.msra.mxu0 %v1899
    %1949 = vmatprep.subr.bf16.mxu0 %v1896
    %1950 = vmatpush1.bf16.msra.mxu0 %v1895
    %1951 = vmatprep.subr.bf16.mxu0 %v1892
    %1952 = vmatpush1.bf16.msra.mxu0 %v1891
    %1953 = vmatprep.subr.bf16.mxu0 %v1888
    %1954 = vmatpush1.bf16.msra.mxu0 %v1887
    %1955 = vmatprep.subr.bf16.mxu0 %v1884
    %1956 = vmatpush1.bf16.msra.mxu0 %v1883
    %1957 = vmatprep.subr.bf16.mxu0 %v1880
    %1958 = vmatpush1.bf16.msra.mxu0 %v1879
    %1959 = vmatprep.subr.bf16.mxu0 0
    %1960 = vmatpush2.bf16.msra.mxu0 0
    %1961 = vmatprep.subr.bf16.mxu0 0
    %1962 = vmatpush2.bf16.msra.mxu0 0
    %1963 = vmatprep.subr.bf16.mxu0 0
    %1964 = vmatpush2.bf16.msra.mxu0 0
    %1965 = vmatprep.subr.bf16.mxu0 0
    %1966 = vmatpush2.bf16.msra.mxu0 0
    %1967 = vmatprep.subr.bf16.mxu0 0
    %1968 = vmatpush2.bf16.msra.mxu0 0
    %1969 = vmatprep.subr.bf16.mxu0 0
    %1970 = vmatpush2.bf16.msra.mxu0 0
    %1971 = vmatprep.subr.bf16.mxu0 0
    %1972 = vmatpush2.bf16.msra.mxu0 0
    %1973 = vmatprep.subr.bf16.mxu0 0
    %1974 = vmatpush2.bf16.msra.mxu0 0
    %1975 = vmatprep.mubr.bf16.mxu0 0
    %1976 = vmatmul.mubr.bf16.gmra.mxu0 %v1727
    %v1977 = vpop.f32.mrf.mxu0
    %v1978 = vadd.f32 %v1766, %v1977
    %v1979 = vpop.f32.mrf.mxu0
    %v1980 = vadd.f32 %v1770, %v1979
    %v1981 = vpop.f32.mrf.mxu0
    %v1982 = vadd.f32 %v1766, %v1981
    %v1983 = vpop.f32.mrf.mxu0
    %v1984 = vadd.f32 %v1770, %v1983
    %1985 = vmatprep.mubr.bf16.mxu0 0
    %1986 = vmatmul.mubr.bf16.gmra.mxu0 %v1728
    %v1987 = vpop.f32.mrf.mxu0
    %v1988 = vadd.f32 %v1766, %v1987
    %v1989 = vpop.f32.mrf.mxu0
    %v1990 = vadd.f32 %v1770, %v1989
    %v1991 = vpop.f32.mrf.mxu0
    %v1992 = vadd.f32 %v1766, %v1991
    %v1993 = vpop.f32.mrf.mxu0
    %v1994 = vadd.f32 %v1770, %v1993
    %1995 = vdwg.mxu0
    %1996 = vmatprep.subr.bf16.mxu0 %v1910
    %1997 = vmatpush1.bf16.msra.mxu0 %v1909
    %1998 = vmatprep.subr.bf16.mxu0 %v1906
    %1999 = vmatpush1.bf16.msra.mxu0 %v1905
    %2000 = vmatprep.subr.bf16.mxu0 %v1902
    %2001 = vmatpush1.bf16.msra.mxu0 %v1901
    %2002 = vmatprep.subr.bf16.mxu0 %v1898
    %2003 = vmatpush1.bf16.msra.mxu0 %v1897
    %2004 = vmatprep.subr.bf16.mxu0 %v1894
    %2005 = vmatpush1.bf16.msra.mxu0 %v1893
    %2006 = vmatprep.subr.bf16.mxu0 %v1890
    %2007 = vmatpush1.bf16.msra.mxu0 %v1889
    %2008 = vmatprep.subr.bf16.mxu0 %v1886
    %2009 = vmatpush1.bf16.msra.mxu0 %v1885
    %2010 = vmatprep.subr.bf16.mxu0 %v1882
    %2011 = vmatpush1.bf16.msra.mxu0 %v1881
    %2012 = vmatprep.subr.bf16.mxu0 0
    %2013 = vmatpush2.bf16.msra.mxu0 0
    %2014 = vmatprep.subr.bf16.mxu0 0
    %2015 = vmatpush2.bf16.msra.mxu0 0
    %2016 = vmatprep.subr.bf16.mxu0 0
    %2017 = vmatpush2.bf16.msra.mxu0 0
    %2018 = vmatprep.subr.bf16.mxu0 0
    %2019 = vmatpush2.bf16.msra.mxu0 0
    %2020 = vmatprep.subr.bf16.mxu0 0
    %2021 = vmatpush2.bf16.msra.mxu0 0
    %2022 = vmatprep.subr.bf16.mxu0 0
    %2023 = vmatpush2.bf16.msra.mxu0 0
    %2024 = vmatprep.subr.bf16.mxu0 0
    %2025 = vmatpush2.bf16.msra.mxu0 0
    %2026 = vmatprep.subr.bf16.mxu0 0
    %2027 = vmatpush2.bf16.msra.mxu0 0
    %2028 = vmatprep.mubr.bf16.mxu0 0
    %2029 = vmatmul.mubr.bf16.gmra.mxu0 %v1727
    %v2030 = vpop.f32.mrf.mxu0
    %v2031 = vadd.f32 %v1774, %v2030
    %v2032 = vpop.f32.mrf.mxu0
    %v2033 = vadd.f32 %v1778, %v2032
    %v2034 = vpop.f32.mrf.mxu0
    %v2035 = vadd.f32 %v1774, %v2034
    %v2036 = vpop.f32.mrf.mxu0
    %v2037 = vadd.f32 %v1778, %v2036
    %2038 = vmatprep.mubr.bf16.mxu0 0
    %2039 = vmatmul.mubr.bf16.gmra.mxu0 %v1728
    %v2040 = vpop.f32.mrf.mxu0
    %v2041 = vadd.f32 %v1774, %v2040
    %v2042 = vpop.f32.mrf.mxu0
    %v2043 = vadd.f32 %v1778, %v2042
    %v2044 = vpop.f32.mrf.mxu0
    %v2045 = vadd.f32 %v1774, %v2044
    %v2046 = vpop.f32.mrf.mxu0
    %v2047 = vadd.f32 %v1778, %v2046
    %2048 = vdwg.mxu0
    %v2049 = vmul.f32 %v1978, 0.5
    %v2050 = vmul.f32 %v1980, 0.5
    %v2051 = vmul.f32 %v2031, 0.5
    %v2052 = vmul.f32 %v2033, 0.5
    %v2053 = vmul.f32 %v1982, 0.5
    %v2054 = vmul.f32 %v1984, 0.5
    %v2055 = vmul.f32 %v2035, 0.5
    %v2056 = vmul.f32 %v2037, 0.5
    %v2057 = vmul.f32 %v1988, 0.5
    %v2058 = vmul.f32 %v1990, 0.5
    %v2059 = vmul.f32 %v2041, 0.5
    %v2060 = vmul.f32 %v2043, 0.5
    %v2061 = vmul.f32 %v1992, 0.5
    %v2062 = vmul.f32 %v1994, 0.5
    %v2063 = vmul.f32 %v2045, 0.5
    %v2064 = vmul.f32 %v2047, 0.5
    %v2065 = vmul.f32 %v1978, 0.044715
    %v2066 = vmul.f32 %v1980, 0.044715
    %v2067 = vmul.f32 %v2031, 0.044715
    %v2068 = vmul.f32 %v2033, 0.044715
    %v2069 = vmul.f32 %v1982, 0.044715
    %v2070 = vmul.f32 %v1984, 0.044715
    %v2071 = vmul.f32 %v2035, 0.044715
    %v2072 = vmul.f32 %v2037, 0.044715
    %v2073 = vmul.f32 %v1988, 0.044715
    %v2074 = vmul.f32 %v1990, 0.044715
    %v2075 = vmul.f32 %v2041, 0.044715
    %v2076 = vmul.f32 %v2043, 0.044715
    %v2077 = vmul.f32 %v1992, 0.044715
    %v2078 = vmul.f32 %v1994, 0.044715
    %v2079 = vmul.f32 %v2045, 0.044715
    %v2080 = vmul.f32 %v2047, 0.044715
    %v2081 = vmul.f32 %v2065, %v1978
    %v2082 = vmul.f32 %v2066, %v1980
    %v2083 = vmul.f32 %v2067, %v2031
    %v2084 = vmul.f32 %v2068, %v2033
    %v2085 = vmul.f32 %v2069, %v1982
    %v2086 = vmul.f32 %v2070, %v1984
    %v2087 = vmul.f32 %v2071, %v2035
    %v2088 = vmul.f32 %v2072, %v2037
    %v2089 = vmul.f32 %v2073, %v1988
    %v2090 = vmul.f32 %v2074, %v1990
    %v2091 = vmul.f32 %v2075, %v2041
    %v2092 = vmul.f32 %v2076, %v2043
    %v2093 = vmul.f32 %v2077, %v1992
    %v2094 = vmul.f32 %v2078, %v1994
    %v2095 = vmul.f32 %v2079, %v2045
    %v2096 = vmul.f32 %v2080, %v2047
    %v2097 = vmul.f32 %v2081, %v1978
    %v2098 = vmul.f32 %v2082, %v1980
    %v2099 = vmul.f32 %v2083, %v2031
    %v2100 = vmul.f32 %v2084, %v2033
    %v2101 = vmul.f32 %v2085, %v1982
    %v2102 = vmul.f32 %v2086, %v1984
    %v2103 = vmul.f32 %v2087, %v2035
    %v2104 = vmul.f32 %v2088, %v2037
    %v2105 = vmul.f32 %v2089, %v1988
    %v2106 = vmul.f32 %v2090, %v1990
    %v2107 = vmul.f32 %v2091, %v2041
    %v2108 = vmul.f32 %v2092, %v2043
    %v2109 = vmul.f32 %v2093, %v1992
    %v2110 = vmul.f32 %v2094, %v1994
    %v2111 = vmul.f32 %v2095, %v2045
    %v2112 = vmul.f32 %v2096, %v2047
    %v2113 = vadd.f32 %v1978, %v2097
    %v2114 = vadd.f32 %v1980, %v2098
    %v2115 = vadd.f32 %v2031, %v2099
    %v2116 = vadd.f32 %v2033, %v2100
    %v2117 = vadd.f32 %v1982, %v2101
    %v2118 = vadd.f32 %v1984, %v2102
    %v2119 = vadd.f32 %v2035, %v2103
    %v2120 = vadd.f32 %v2037, %v2104
    %v2121 = vadd.f32 %v1988, %v2105
    %v2122 = vadd.f32 %v1990, %v2106
    %v2123 = vadd.f32 %v2041, %v2107
    %v2124 = vadd.f32 %v2043, %v2108
    %v2125 = vadd.f32 %v1992, %v2109
    %v2126 = vadd.f32 %v1994, %v2110
    %v2127 = vadd.f32 %v2045, %v2111
    %v2128 = vadd.f32 %v2047, %v2112
    %v2129 = vmul.f32 %v2113, 0.7978846
    %v2130 = vmul.f32 %v2114, 0.7978846
    %v2131 = vmul.f32 %v2115, 0.7978846
    %v2132 = vmul.f32 %v2116, 0.7978846
    %v2133 = vmul.f32 %v2117, 0.7978846
    %v2134 = vmul.f32 %v2118, 0.7978846
    %v2135 = vmul.f32 %v2119, 0.7978846
    %v2136 = vmul.f32 %v2120, 0.7978846
    %v2137 = vmul.f32 %v2121, 0.7978846
    %v2138 = vmul.f32 %v2122, 0.7978846
    %v2139 = vmul.f32 %v2123, 0.7978846
    %v2140 = vmul.f32 %v2124, 0.7978846
    %v2141 = vmul.f32 %v2125, 0.7978846
    %v2142 = vmul.f32 %v2126, 0.7978846
    %v2143 = vmul.f32 %v2127, 0.7978846
    %v2144 = vmul.f32 %v2128, 0.7978846
    %v2145 = vtanh.pop %v2129
    %v2146 = vtanh.pop %v2130
    %v2147 = vtanh.pop %v2131
    %v2148 = vtanh.pop %v2132
    %v2149 = vtanh.pop %v2133
    %v2150 = vtanh.pop %v2134
    %v2151 = vtanh.pop %v2135
    %v2152 = vtanh.pop %v2136
    %v2153 = vtanh.pop %v2137
    %v2154 = vtanh.pop %v2138
    %v2155 = vtanh.pop %v2139
    %v2156 = vtanh.pop %v2140
    %v2157 = vtanh.pop %v2141
    %v2158 = vtanh.pop %v2142
    %v2159 = vtanh.pop %v2143
    %v2160 = vtanh.pop %v2144
    %v2161 = vadd.f32 %v2145, 1.0
    %v2162 = vadd.f32 %v2146, 1.0
    %v2163 = vadd.f32 %v2147, 1.0
    %v2164 = vadd.f32 %v2148, 1.0
    %v2165 = vadd.f32 %v2149, 1.0
    %v2166 = vadd.f32 %v2150, 1.0
    %v2167 = vadd.f32 %v2151, 1.0
    %v2168 = vadd.f32 %v2152, 1.0
    %v2169 = vadd.f32 %v2153, 1.0
    %v2170 = vadd.f32 %v2154, 1.0
    %v2171 = vadd.f32 %v2155, 1.0
    %v2172 = vadd.f32 %v2156, 1.0
    %v2173 = vadd.f32 %v2157, 1.0
    %v2174 = vadd.f32 %v2158, 1.0
    %v2175 = vadd.f32 %v2159, 1.0
    %v2176 = vadd.f32 %v2160, 1.0
    %v2177 = vmul.f32 %v2049, %v2161
    %v2178 = vmul.f32 %v2050, %v2162
    %v2179 = vmul.f32 %v2051, %v2163
    %v2180 = vmul.f32 %v2052, %v2164
    %v2181 = vmul.f32 %v2053, %v2165
    %v2182 = vmul.f32 %v2054, %v2166
    %v2183 = vmul.f32 %v2055, %v2167
    %v2184 = vmul.f32 %v2056, %v2168
    %v2185 = vmul.f32 %v2057, %v2169
    %v2186 = vmul.f32 %v2058, %v2170
    %v2187 = vmul.f32 %v2059, %v2171
    %v2188 = vmul.f32 %v2060, %v2172
    %v2189 = vmul.f32 %v2061, %v2173
    %v2190 = vmul.f32 %v2062, %v2174
    %v2191 = vmul.f32 %v2063, %v2175
    %v2192 = vmul.f32 %v2064, %v2176
    %v2193 = vpack.c.bf16 %v2181, %v2177
    %v2194 = vpack.c.bf16 %v2182, %v2178
    %v2195 = vpack.c.bf16 %v2183, %v2179
    %v2196 = vpack.c.bf16 %v2184, %v2180
    %v2197 = vpack.c.bf16 %v2189, %v2185
    %v2198 = vpack.c.bf16 %v2190, %v2186
    %v2199 = vpack.c.bf16 %v2191, %v2187
    %v2200 = vpack.c.bf16 %v2192, %v2188
    %v2201 = vld [vmem:[#allocation13] sm:$0xf]
    %v2202 = vld [vmem:[#allocation13 + $0x4] sm:$0xf]
    %v2203 = vld [vmem:[#allocation13 + $0x8] sm:$0xf]
    %v2204 = vld [vmem:[#allocation13 + $0xc] sm:$0xf]
    %v2205 = vld [vmem:[#allocation13 + $0x10] sm:$0xf]
    %v2206 = vld [vmem:[#allocation13 + $0x14] sm:$0xf]
    %v2207 = vld [vmem:[#allocation13 + $0x18] sm:$0xf]
    %v2208 = vld [vmem:[#allocation13 + $0x1c] sm:$0xf]
    %v2209 = vld [vmem:[#allocation13 + $0x20] sm:$0xf]
    %v2210 = vld [vmem:[#allocation13 + $0x24] sm:$0xf]
    %v2211 = vld [vmem:[#allocation13 + $0x28] sm:$0xf]
    %v2212 = vld [vmem:[#allocation13 + $0x2c] sm:$0xf]
    %v2213 = vld [vmem:[#allocation13 + $0x30] sm:$0xf]
    %v2214 = vld [vmem:[#allocation13 + $0x34] sm:$0xf]
    %v2215 = vld [vmem:[#allocation13 + $0x38] sm:$0xf]
    %v2216 = vld [vmem:[#allocation13 + $0x3c] sm:$0xf]
    %v2217 = vld [vmem:[#allocation13 + $0x40] sm:$0xf]
    %v2218 = vld [vmem:[#allocation13 + $0x44] sm:$0xf]
    %v2219 = vld [vmem:[#allocation13 + $0x48] sm:$0xf]
    %v2220 = vld [vmem:[#allocation13 + $0x4c] sm:$0xf]
    %v2221 = vld [vmem:[#allocation13 + $0x50] sm:$0xf]
    %v2222 = vld [vmem:[#allocation13 + $0x54] sm:$0xf]
    %v2223 = vld [vmem:[#allocation13 + $0x58] sm:$0xf]
    %v2224 = vld [vmem:[#allocation13 + $0x5c] sm:$0xf]
    %v2225 = vld [vmem:[#allocation13 + $0x60] sm:$0xf]
    %v2226 = vld [vmem:[#allocation13 + $0x64] sm:$0xf]
    %v2227 = vld [vmem:[#allocation13 + $0x68] sm:$0xf]
    %v2228 = vld [vmem:[#allocation13 + $0x6c] sm:$0xf]
    %v2229 = vld [vmem:[#allocation13 + $0x70] sm:$0xf]
    %v2230 = vld [vmem:[#allocation13 + $0x74] sm:$0xf]
    %v2231 = vld [vmem:[#allocation13 + $0x78] sm:$0xf]
    %v2232 = vld [vmem:[#allocation13 + $0x7c] sm:$0xf]
    %v2233 = vld [vmem:[#allocation13 + $0x80] sm:$0xf]
    %v2234 = vld [vmem:[#allocation13 + $0x84] sm:$0xf]
    %v2235 = vld [vmem:[#allocation13 + $0x88] sm:$0xf]
    %v2236 = vld [vmem:[#allocation13 + $0x8c] sm:$0xf]
    %v2237 = vld [vmem:[#allocation13 + $0x90] sm:$0xf]
    %v2238 = vld [vmem:[#allocation13 + $0x94] sm:$0xf]
    %v2239 = vld [vmem:[#allocation13 + $0x98] sm:$0xf]
    %v2240 = vld [vmem:[#allocation13 + $0x9c] sm:$0xf]
    %v2241 = vld [vmem:[#allocation13 + $0xa0] sm:$0xf]
    %v2242 = vld [vmem:[#allocation13 + $0xa4] sm:$0xf]
    %v2243 = vld [vmem:[#allocation13 + $0xa8] sm:$0xf]
    %v2244 = vld [vmem:[#allocation13 + $0xac] sm:$0xf]
    %v2245 = vld [vmem:[#allocation13 + $0xb0] sm:$0xf]
    %v2246 = vld [vmem:[#allocation13 + $0xb4] sm:$0xf]
    %v2247 = vld [vmem:[#allocation13 + $0xb8] sm:$0xf]
    %v2248 = vld [vmem:[#allocation13 + $0xbc] sm:$0xf]
    %v2249 = vld [vmem:[#allocation13 + $0xc0] sm:$0xf]
    %v2250 = vld [vmem:[#allocation13 + $0xc4] sm:$0xf]
    %v2251 = vld [vmem:[#allocation13 + $0xc8] sm:$0xf]
    %v2252 = vld [vmem:[#allocation13 + $0xcc] sm:$0xf]
    %v2253 = vld [vmem:[#allocation13 + $0xd0] sm:$0xf]
    %v2254 = vld [vmem:[#allocation13 + $0xd4] sm:$0xf]
    %v2255 = vld [vmem:[#allocation13 + $0xd8] sm:$0xf]
    %v2256 = vld [vmem:[#allocation13 + $0xdc] sm:$0xf]
    %v2257 = vld [vmem:[#allocation13 + $0xe0] sm:$0xf]
    %v2258 = vld [vmem:[#allocation13 + $0xe4] sm:$0xf]
    %v2259 = vld [vmem:[#allocation13 + $0xe8] sm:$0xf]
    %v2260 = vld [vmem:[#allocation13 + $0xec] sm:$0xf]
    %v2261 = vld [vmem:[#allocation13 + $0xf0] sm:$0xf]
    %v2262 = vld [vmem:[#allocation13 + $0xf4] sm:$0xf]
    %v2263 = vld [vmem:[#allocation13 + $0xf8] sm:$0xf]
    %v2264 = vld [vmem:[#allocation13 + $0xfc] sm:$0xf]
    %v2265 = vld [vmem:[%s12] sm:$0x1]
    %v2267 = vlaneseq
    %v2268 = vshrl.u32 %v2267, 7
    %v2269 = vsub.s32 0, %v2268
    %v2270 = vrot.slane %v2265, %v2269
    %v2336 = vunpack.c.l.b16 %v2201
    %v2337 = vunpack.c.l.b16 %v2202
    %v2338 = vunpack.c.l.b16 %v2203
    %v2339 = vunpack.c.l.b16 %v2204
    %v2340 = vunpack.c.l.b16 %v2205
    %v2341 = vunpack.c.l.b16 %v2206
    %v2342 = vunpack.c.l.b16 %v2207
    %v2343 = vunpack.c.l.b16 %v2208
    %v2344 = vunpack.c.l.b16 %v2209
    %v2345 = vunpack.c.l.b16 %v2210
    %v2346 = vunpack.c.l.b16 %v2211
    %v2347 = vunpack.c.l.b16 %v2212
    %v2348 = vunpack.c.l.b16 %v2213
    %v2349 = vunpack.c.l.b16 %v2214
    %v2350 = vunpack.c.l.b16 %v2215
    %v2351 = vunpack.c.l.b16 %v2216
    %v2352 = vunpack.c.l.b16 %v2217
    %v2353 = vunpack.c.l.b16 %v2218
    %v2354 = vunpack.c.l.b16 %v2219
    %v2355 = vunpack.c.l.b16 %v2220
    %v2356 = vunpack.c.l.b16 %v2221
    %v2357 = vunpack.c.l.b16 %v2222
    %v2358 = vunpack.c.l.b16 %v2223
    %v2359 = vunpack.c.l.b16 %v2224
    %v2360 = vunpack.c.l.b16 %v2225
    %v2361 = vunpack.c.l.b16 %v2226
    %v2362 = vunpack.c.l.b16 %v2227
    %v2363 = vunpack.c.l.b16 %v2228
    %v2364 = vunpack.c.l.b16 %v2229
    %v2365 = vunpack.c.l.b16 %v2230
    %v2366 = vunpack.c.l.b16 %v2231
    %v2367 = vunpack.c.l.b16 %v2232
    %v2368 = vunpack.c.l.b16 %v2233
    %v2369 = vunpack.c.l.b16 %v2234
    %v2370 = vunpack.c.l.b16 %v2235
    %v2371 = vunpack.c.l.b16 %v2236
    %v2372 = vunpack.c.l.b16 %v2237
    %v2373 = vunpack.c.l.b16 %v2238
    %v2374 = vunpack.c.l.b16 %v2239
    %v2375 = vunpack.c.l.b16 %v2240
    %v2376 = vunpack.c.l.b16 %v2241
    %v2377 = vunpack.c.l.b16 %v2242
    %v2378 = vunpack.c.l.b16 %v2243
    %v2379 = vunpack.c.l.b16 %v2244
    %v2380 = vunpack.c.l.b16 %v2245
    %v2381 = vunpack.c.l.b16 %v2246
    %v2382 = vunpack.c.l.b16 %v2247
    %v2383 = vunpack.c.l.b16 %v2248
    %v2384 = vunpack.c.l.b16 %v2249
    %v2385 = vunpack.c.l.b16 %v2250
    %v2386 = vunpack.c.l.b16 %v2251
    %v2387 = vunpack.c.l.b16 %v2252
    %v2388 = vunpack.c.l.b16 %v2253
    %v2389 = vunpack.c.l.b16 %v2254
    %v2390 = vunpack.c.l.b16 %v2255
    %v2391 = vunpack.c.l.b16 %v2256
    %v2392 = vunpack.c.l.b16 %v2257
    %v2393 = vunpack.c.l.b16 %v2258
    %v2394 = vunpack.c.l.b16 %v2259
    %v2395 = vunpack.c.l.b16 %v2260
    %v2396 = vunpack.c.l.b16 %v2261
    %v2397 = vunpack.c.l.b16 %v2262
    %v2398 = vunpack.c.l.b16 %v2263
    %v2399 = vunpack.c.l.b16 %v2264
    %v2400 = vpack.c.b16 %v2337, %v2336
    %v2401 = vpack.c.b16 %v2339, %v2338
    %v2402 = vpack.c.b16 %v2341, %v2340
    %v2403 = vpack.c.b16 %v2343, %v2342
    %v2404 = vpack.c.b16 %v2345, %v2344
    %v2405 = vpack.c.b16 %v2347, %v2346
    %v2406 = vpack.c.b16 %v2349, %v2348
    %v2407 = vpack.c.b16 %v2351, %v2350
    %v2408 = vpack.c.b16 %v2353, %v2352
    %v2409 = vpack.c.b16 %v2355, %v2354
    %v2410 = vpack.c.b16 %v2357, %v2356
    %v2411 = vpack.c.b16 %v2359, %v2358
    %v2412 = vpack.c.b16 %v2361, %v2360
    %v2413 = vpack.c.b16 %v2363, %v2362
    %v2414 = vpack.c.b16 %v2365, %v2364
    %v2415 = vpack.c.b16 %v2367, %v2366
    %v2416 = vpack.c.b16 %v2369, %v2368
    %v2417 = vpack.c.b16 %v2371, %v2370
    %v2418 = vpack.c.b16 %v2373, %v2372
    %v2419 = vpack.c.b16 %v2375, %v2374
    %v2420 = vpack.c.b16 %v2377, %v2376
    %v2421 = vpack.c.b16 %v2379, %v2378
    %v2422 = vpack.c.b16 %v2381, %v2380
    %v2423 = vpack.c.b16 %v2383, %v2382
    %v2424 = vpack.c.b16 %v2385, %v2384
    %v2425 = vpack.c.b16 %v2387, %v2386
    %v2426 = vpack.c.b16 %v2389, %v2388
    %v2427 = vpack.c.b16 %v2391, %v2390
    %v2428 = vpack.c.b16 %v2393, %v2392
    %v2429 = vpack.c.b16 %v2395, %v2394
    %v2430 = vpack.c.b16 %v2397, %v2396
    %v2431 = vpack.c.b16 %v2399, %v2398
    %2464 = vmatprep.subr.bf16.mxu0 0
    %2465 = vmatpush1.bf16.msra.mxu0 %v2407
    %2466 = vmatprep.subr.bf16.mxu0 0
    %2467 = vmatpush1.bf16.msra.mxu0 %v2406
    %2468 = vmatprep.subr.bf16.mxu0 0
    %2469 = vmatpush1.bf16.msra.mxu0 %v2405
    %2470 = vmatprep.subr.bf16.mxu0 0
    %2471 = vmatpush1.bf16.msra.mxu0 %v2404
    %2472 = vmatprep.subr.bf16.mxu0 0
    %2473 = vmatpush1.bf16.msra.mxu0 %v2403
    %2474 = vmatprep.subr.bf16.mxu0 0
    %2475 = vmatpush1.bf16.msra.mxu0 %v2402
    %2476 = vmatprep.subr.bf16.mxu0 0
    %2477 = vmatpush1.bf16.msra.mxu0 %v2401
    %2478 = vmatprep.subr.bf16.mxu0 0
    %2479 = vmatpush1.bf16.msra.mxu0 %v2400
    %2480 = vmatprep.subr.bf16.mxu0 0
    %2481 = vmatpush2.bf16.msra.mxu0 %v2415
    %2482 = vmatprep.subr.bf16.mxu0 0
    %2483 = vmatpush2.bf16.msra.mxu0 %v2414
    %2484 = vmatprep.subr.bf16.mxu0 0
    %2485 = vmatpush2.bf16.msra.mxu0 %v2413
    %2486 = vmatprep.subr.bf16.mxu0 0
    %2487 = vmatpush2.bf16.msra.mxu0 %v2412
    %2488 = vmatprep.subr.bf16.mxu0 0
    %2489 = vmatpush2.bf16.msra.mxu0 %v2411
    %2490 = vmatprep.subr.bf16.mxu0 0
    %2491 = vmatpush2.bf16.msra.mxu0 %v2410
    %2492 = vmatprep.subr.bf16.mxu0 0
    %2493 = vmatpush2.bf16.msra.mxu0 %v2409
    %2494 = vmatprep.subr.bf16.mxu0 0
    %2495 = vmatpush2.bf16.msra.mxu0 %v2408
    %2496 = vmatprep.mubr.bf16.mxu0 %v2194
    %2497 = vmatmul.mubr.bf16.gmra.mxu0 %v2193
    %v2498 = vpop.f32.mrf.mxu0
    %v2499 = vadd.f32 %v2270, %v2498
    %v2500 = vpop.f32.mrf.mxu0
    %v2501 = vpop.f32.mrf.mxu0
    %v2502 = vadd.f32 %v2270, %v2501
    %v2503 = vpop.f32.mrf.mxu0
    %2504 = vmatprep.mubr.bf16.mxu0 %v2198
    %2505 = vmatmul.mubr.bf16.gmra.mxu0 %v2197
    %v2506 = vpop.f32.mrf.mxu0
    %v2507 = vadd.f32 %v2270, %v2506
    %v2508 = vpop.f32.mrf.mxu0
    %v2509 = vpop.f32.mrf.mxu0
    %v2510 = vadd.f32 %v2270, %v2509
    %v2511 = vpop.f32.mrf.mxu0
    %2512 = vdwg.mxu0
    %2513 = vmatprep.subr.bf16.mxu0 0
    %2514 = vmatpush1.bf16.msra.mxu0 %v2423
    %2515 = vmatprep.subr.bf16.mxu0 0
    %2516 = vmatpush1.bf16.msra.mxu0 %v2422
    %2517 = vmatprep.subr.bf16.mxu0 0
    %2518 = vmatpush1.bf16.msra.mxu0 %v2421
    %2519 = vmatprep.subr.bf16.mxu0 0
    %2520 = vmatpush1.bf16.msra.mxu0 %v2420
    %2521 = vmatprep.subr.bf16.mxu0 0
    %2522 = vmatpush1.bf16.msra.mxu0 %v2419
    %2523 = vmatprep.subr.bf16.mxu0 0
    %2524 = vmatpush1.bf16.msra.mxu0 %v2418
    %2525 = vmatprep.subr.bf16.mxu0 0
    %2526 = vmatpush1.bf16.msra.mxu0 %v2417
    %2527 = vmatprep.subr.bf16.mxu0 0
    %2528 = vmatpush1.bf16.msra.mxu0 %v2416
    %2529 = vmatprep.subr.bf16.mxu0 0
    %2530 = vmatpush2.bf16.msra.mxu0 %v2431
    %2531 = vmatprep.subr.bf16.mxu0 0
    %2532 = vmatpush2.bf16.msra.mxu0 %v2430
    %2533 = vmatprep.subr.bf16.mxu0 0
    %2534 = vmatpush2.bf16.msra.mxu0 %v2429
    %2535 = vmatprep.subr.bf16.mxu0 0
    %2536 = vmatpush2.bf16.msra.mxu0 %v2428
    %2537 = vmatprep.subr.bf16.mxu0 0
    %2538 = vmatpush2.bf16.msra.mxu0 %v2427
    %2539 = vmatprep.subr.bf16.mxu0 0
    %2540 = vmatpush2.bf16.msra.mxu0 %v2426
    %2541 = vmatprep.subr.bf16.mxu0 0
    %2542 = vmatpush2.bf16.msra.mxu0 %v2425
    %2543 = vmatprep.subr.bf16.mxu0 0
    %2544 = vmatpush2.bf16.msra.mxu0 %v2424
    %2545 = vmatprep.mubr.bf16.mxu0 %v2196
    %2546 = vmatmul.mubr.bf16.gmra.mxu0 %v2195
    %v2547 = vpop.f32.mrf.mxu0
    %v2548 = vadd.f32 %v2499, %v2547
    %v2549 = vpop.f32.mrf.mxu0
    %v2550 = vpop.f32.mrf.mxu0
    %v2551 = vadd.f32 %v2502, %v2550
    %v2552 = vpop.f32.mrf.mxu0
    %2553 = vmatprep.mubr.bf16.mxu0 %v2200
    %2554 = vmatmul.mubr.bf16.gmra.mxu0 %v2199
    %v2555 = vpop.f32.mrf.mxu0
    %v2556 = vadd.f32 %v2507, %v2555
    %v2557 = vpop.f32.mrf.mxu0
    %v2558 = vpop.f32.mrf.mxu0
    %v2559 = vadd.f32 %v2510, %v2558
    %v2560 = vpop.f32.mrf.mxu0
    %2561 = vdwg.mxu0
    %v2562 = vadd.f32 %v1657, %v2548
    %v2563 = vadd.f32 %v1658, %v2551
    %v2564 = vadd.f32 %v1659, %v2556
    %v2565 = vadd.f32 %v1660, %v2559
    %2566 = vst [vmem:[#allocation14] sm:$0xff] %v2562
    %2567 = vst [vmem:[#allocation14 + $0x8] sm:$0xff] %v2563
    %2568 = vst [vmem:[#allocation14 + $0x10] sm:$0xff] %v2564
    %2569 = vst [vmem:[#allocation14 + $0x18] sm:$0xff] %v2565
    // Predicated region
    $region82: #{tpu_custom_call.1} parent=1 // pred_check
      _
    $region83: #{tpu_custom_call.1} parent=1 // pred_check_branch
      %2571 = sbr.rel (0) target = $region85
    $region84: #{tpu_custom_call.1} parent=1 // pred_region
      %s2573 = ssub.s32 512, 512
      %2574 = vsyncadd [#allocation4], %s2573
      %s2575 = sshll.u32 [#allocation14], 4
      %s2576 = int_to_ptr.vmem [resolvable:$true] %s2575
      %2581 = dma.vmem_to_hbm [thread:$0]  %s2576, 512, %s13, [#allocation4], 128, 128, 8
    $region85: #{tpu_custom_call.1} parent=1 // pred_fallthru
      _
    // Predicated region
    $region86: #{tpu_custom_call.1} parent=1 // pred_check
      _
    $region87: #{tpu_custom_call.1} parent=1 // pred_check_branch
      %2583 = sbr.rel (0) target = $region89
    $region88: #{tpu_custom_call.1} parent=1 // pred_region
      %2584 = dma.done [#allocation4], 512
    $region89: #{tpu_custom_call.1} parent=1 // pred_fallthru
      _
    %2585 = vsyncpa [#allocation3], 1
    %2586 = vsyncpa [#allocation6], 1
    %2587 = vsyncpa [#allocation9], 1
    %2588 = vsyncpa [#allocation12], 1
    %2589 = vsyncpa [#allocation4], 1

</llo_original>
